<compile_context>
chip_gen: v6e
topology: v6e:2x2x1
jax: 0.10.0
libtpu: 0.0.40
codegen_flags: <defaults>
</compile_context>

<pallas_src>
import functools

import jax
import jax.numpy as jnp
from jax.experimental import pallas as pl
from jax.experimental.pallas import tpu as pltpu


def _round_up(x, m):
    return (x + m - 1) // m * m


def _lstm_recurrence_kernel(gx_ref, whh_ref, hout_ref, h_sc, c_sc,
                            *, hidden_pad, t_blk):
    """One grid step == T_BLK LSTM time steps for one batch block.

    gx_ref : (T_BLK, B_BLK, 4*H_pad) f32   precomputed x@W_ih^T + b (gate order i,f,g,o)
    whh_ref: (H_pad, 4*H_pad)       bf16   transposed recurrent weight
    hout_ref: (B_BLK, H_pad)        f32    final hidden state (written on last block)
    h_sc/c_sc: (B_BLK, H_pad)       f32    recurrent state, resident across time blocks
    """
    tb = pl.program_id(1)

    @pl.when(tb == 0)
    def _():
        h_sc[...] = jnp.zeros_like(h_sc)
        c_sc[...] = jnp.zeros_like(c_sc)

    whh = whh_ref[...]                       # (H_pad, 4*H_pad) bf16, loop-invariant
    H = hidden_pad

    def step(t, carry):
        h, c = carry                         # f32 (B_BLK, H_pad)
        gx = gx_ref[t]                       # f32 (B_BLK, 4*H_pad)
        # Only the recurrent matmul remains in the serial loop; bf16 MXU
        # operands, f32 accumulation.  Gate elementwise math stays f32
        # (v5e has no bf16 VPU/EUP path).
        gates = gx + jnp.dot(h.astype(jnp.bfloat16), whh,
                             preferred_element_type=jnp.float32)
        # H is a multiple of 128, so every slice is full-lane (free selection).
        i_g = jax.nn.sigmoid(gates[:, 0 * H:1 * H])
        f_g = jax.nn.sigmoid(gates[:, 1 * H:2 * H])
        g_g = jnp.tanh(gates[:, 2 * H:3 * H])
        o_g = jax.nn.sigmoid(gates[:, 3 * H:4 * H])
        c_new = f_g * c + i_g * g_g
        h_new = o_g * jnp.tanh(c_new)
        return h_new, c_new

    h, c = jax.lax.fori_loop(0, t_blk, step, (h_sc[...], c_sc[...]),
                             unroll=True)
    h_sc[...] = h
    c_sc[...] = c

    @pl.when(tb == pl.num_programs(1) - 1)
    def _():
        hout_ref[...] = h                    # lane-dense (B_BLK, H_pad) store


def rnn_forward(text, params):
    """text: (seq_len, batch) int32.  Returns (batch, output_dim) float32."""
    emb_table = params["embedding"]          # (V, E)
    wih_t = params["wih_t"]                  # (E, 4H)   (= weight_ih^T)
    whh_t = params["whh_t"]                  # (H, 4H)   (= weight_hh^T)
    bias = params["bias"]                    # (1, 4H)   (= b_ih + b_hh)
    wfc_t = params["wfc_t"]                  # (H, O)
    bfc = params["bfc"]                      # (1, O)

    S, B = text.shape
    E = emb_table.shape[1]
    H = whh_t.shape[0]

    # --- padding so tiles are (8, 128)-aligned and gate slices lane-aligned ---
    H_pad = _round_up(H, 128)
    B_pad = _round_up(B, 8)
    if B_pad > 128:
        B_pad = _round_up(B, 128)
    B_blk = min(B_pad, 128)
    T_blk = next(t for t in (32, 16, 8, 4, 2, 1) if S % t == 0)

    def pad_gate_cols(w):                    # (..., 4H) -> (..., 4*H_pad), zeros
        w4 = w.reshape(*w.shape[:-1], 4, H)
        w4 = jnp.pad(w4, [(0, 0)] * (w4.ndim - 1) + [(0, H_pad - H)])
        return w4.reshape(*w.shape[:-1], 4 * H_pad)

    wih_p = pad_gate_cols(wih_t)                                        # (E, 4*H_pad)
    whh_p = pad_gate_cols(jnp.pad(whh_t, ((0, H_pad - H), (0, 0))))     # (H_pad, 4*H_pad)
    bias_p = pad_gate_cols(bias)                                        # (1, 4*H_pad)

    # --- glue in plain XLA: embedding gather + batched input projection ---
    embedded = emb_table[text]                                          # (S, B, E)
    embedded = jnp.pad(embedded, ((0, 0), (0, B_pad - B), (0, 0)))      # (S, B_pad, E)
    gates_x = (jnp.dot(embedded.reshape(S * B_pad, E).astype(jnp.bfloat16),
                       wih_p.astype(jnp.bfloat16),
                       preferred_element_type=jnp.float32)
               + bias_p).reshape(S, B_pad, 4 * H_pad)                   # f32

    whh_bf16 = whh_p.astype(jnp.bfloat16)

    kernel = functools.partial(_lstm_recurrence_kernel,
                               hidden_pad=H_pad, t_blk=T_blk)

    cost = pl.CostEstimate(
        flops=2 * S * B_pad * H_pad * 4 * H_pad,
        transcendentals=5 * S * B_pad * H_pad,
        bytes_accessed=gates_x.size * 4 + whh_bf16.size * 2 + B_pad * H_pad * 4,
    )

    h_final = pl.pallas_call(
        kernel,
        out_shape=jax.ShapeDtypeStruct((B_pad, H_pad), jnp.float32),
        grid_spec=pltpu.PrefetchScalarGridSpec(
            num_scalar_prefetch=0,
            grid=(B_pad // B_blk, S // T_blk),          # (batch blocks, time blocks)
            in_specs=[
                pl.BlockSpec((T_blk, B_blk, 4 * H_pad), lambda b, t: (t, b, 0)),
                pl.BlockSpec((H_pad, 4 * H_pad), lambda b, t: (0, 0)),
            ],
            out_specs=pl.BlockSpec((B_blk, H_pad), lambda b, t: (b, 0)),
            scratch_shapes=[
                pltpu.VMEM((B_blk, H_pad), jnp.float32),   # h
                pltpu.VMEM((B_blk, H_pad), jnp.float32),   # c
            ],
        ),
        compiler_params=pltpu.CompilerParams(
            dimension_semantics=("parallel", "arbitrary"),  # batch megacore / serial time
            vmem_limit_bytes=32 * 1024 * 1024),
        cost_estimate=cost,
    )(gates_x, whh_bf16)

    # FC head as glue (output_dim is tiny; keeping it out of the kernel keeps
    # the kernel's store lane-dense and W_fc out of VMEM residency).
    h_valid = h_final[:B, :H]
    return h_valid @ wfc_t + bfc


def make_params(key, vocab, embed_dim, hidden_dim, output_dim):
    ks = jax.random.split(key, 6)
    scale = 0.1
    return {
        "embedding": scale * jax.random.normal(ks[0], (vocab, embed_dim), jnp.float32),
        "wih_t": scale * jax.random.normal(ks[1], (embed_dim, 4 * hidden_dim), jnp.float32),
        "whh_t": scale * jax.random.normal(ks[2], (hidden_dim, 4 * hidden_dim), jnp.float32),
        "bias": scale * jax.random.normal(ks[3], (1, 4 * hidden_dim), jnp.float32),
        "wfc_t": scale * jax.random.normal(ks[4], (hidden_dim, output_dim), jnp.float32),
        "bfc": scale * jax.random.normal(ks[5], (1, output_dim), jnp.float32),
    }


def rnn_reference(text, params):
    """Pure-JAX f32 reference replicating torch Embedding -> LSTM -> Linear."""
    emb = params["embedding"][text]          # (S, B, E)
    H = params["whh_t"].shape[0]
    B = text.shape[1]

    def step(carry, x_t):
        h, c = carry
        gates = x_t @ params["wih_t"] + h @ params["whh_t"] + params["bias"]
        i = jax.nn.sigmoid(gates[:, 0 * H:1 * H])
        f = jax.nn.sigmoid(gates[:, 1 * H:2 * H])
        g = jnp.tanh(gates[:, 2 * H:3 * H])
        o = jax.nn.sigmoid(gates[:, 3 * H:4 * H])
        c_new = f * c + i * g
        h_new = o * jnp.tanh(c_new)
        return (h_new, c_new), None

    h0 = jnp.zeros((B, H), jnp.float32)
    c0 = jnp.zeros((B, H), jnp.float32)
    (h_fin, _), _ = jax.lax.scan(step, (h0, c0), emb)
    return h_fin @ params["wfc_t"] + params["bfc"]


if __name__ == "__main__":
    vocab, embed_dim, hidden_dim, output_dim = 50, 16, 32, 4
    seq_len, batch = 8, 2

    key = jax.random.PRNGKey(0)
    pkey, tkey = jax.random.split(key)
    params = make_params(pkey, vocab, embed_dim, hidden_dim, output_dim)
    text = jax.random.randint(tkey, (seq_len, batch), 0, vocab, jnp.int32)

    fwd = jax.jit(rnn_forward)
    out = jax.block_until_ready(fwd(text, params))

    ref = rnn_reference(text, params)
    assert out.shape == (batch, output_dim)
    # bf16 MXU operands (per perf guidance) => slightly looser tolerance vs
    # the pure-f32 reference.
    assert jnp.allclose(out, ref, atol=1e-2, rtol=1e-2), (out, ref)

    print("KERNEL_OK")
</pallas_src>

<mosaic_0001>
module attributes {stable_mosaic.version = 11 : i64} {
  func.func @_lstm_recurrence_kernel(%arg0: i32, %arg1: i32, %arg2: memref<8x8x512xf32, #tpu.memory_space<vmem>>, %arg3: memref<128x512xbf16, #tpu.memory_space<vmem>>, %arg4: memref<8x128xf32, #tpu.memory_space<vmem>>, %arg5: memref<8x128xf32, #tpu.memory_space<vmem>>, %arg6: memref<8x128xf32, #tpu.memory_space<vmem>>) attributes {dimension_semantics = [#tpu.dimension_semantics<parallel>, #tpu.dimension_semantics<arbitrary>], iteration_bounds = array<i64: 1, 1>, scalar_prefetch = 0 : i64, scratch_operands = 2 : i64, tpu.core_type = #tpu.core_type<tc>, window_params = [{transform_indices = @transform_0, window_bounds = array<i64: 8, 8, 512>}, {pipeline_mode = #tpu.pipeline_mode<synchronous>, transform_indices = @transform_1, window_bounds = array<i64: 128, 512>}, {transform_indices = @transform_2, window_bounds = array<i64: 8, 128>}]} {
    %c0_i32 = arith.constant 0 : i32
    %0 = arith.cmpi eq, %arg1, %c0_i32 : i32
    %1 = arith.extui %0 : i1 to i32
    %c0_i32_0 = arith.constant 0 : i32
    %2 = arith.cmpi ne, %1, %c0_i32_0 : i32
    scf.if %2 {
      %cst_60 = arith.constant 0.000000e+00 : f32
      %259 = vector.broadcast %cst_60 : f32 to vector<8x128xf32>
      %c0_61 = arith.constant 0 : index
      %c0_62 = arith.constant 0 : index
      %260 = vector.load %arg5[%c0_61, %c0_62] : memref<8x128xf32, #tpu.memory_space<vmem>>, vector<8x128xf32>
      tpu.vector_store %arg5[%c0_61, %c0_62], %259 {strides = array<i32>} : memref<8x128xf32, #tpu.memory_space<vmem>>, vector<8x128xf32>,
      %cst_63 = arith.constant 0.000000e+00 : f32
      %261 = vector.broadcast %cst_63 : f32 to vector<8x128xf32>
      %c0_64 = arith.constant 0 : index
      %c0_65 = arith.constant 0 : index
      %262 = vector.load %arg6[%c0_64, %c0_65] : memref<8x128xf32, #tpu.memory_space<vmem>>, vector<8x128xf32>
      tpu.vector_store %arg6[%c0_64, %c0_65], %261 {strides = array<i32>} : memref<8x128xf32, #tpu.memory_space<vmem>>, vector<8x128xf32>,
    } else {
    }
    %c0 = arith.constant 0 : index
    %c0_1 = arith.constant 0 : index
    %3 = vector.load %arg3[%c0, %c0_1] : memref<128x512xbf16, #tpu.memory_space<vmem>>, vector<128x512xbf16>
    %c0_2 = arith.constant 0 : index
    %c0_3 = arith.constant 0 : index
    %4 = vector.load %arg5[%c0_2, %c0_3] : memref<8x128xf32, #tpu.memory_space<vmem>>, vector<8x128xf32>
    %c0_4 = arith.constant 0 : index
    %c0_5 = arith.constant 0 : index
    %5 = vector.load %arg6[%c0_4, %c0_5] : memref<8x128xf32, #tpu.memory_space<vmem>>, vector<8x128xf32>
    %c0_i32_6 = arith.constant 0 : i32
    %6 = arith.index_cast %c0_i32_6 : i32 to index
    %c0_7 = arith.constant 0 : index
    %c0_8 = arith.constant 0 : index
    %7 = vector.load %arg2[%6, %c0_7, %c0_8] : memref<8x8x512xf32, #tpu.memory_space<vmem>>, vector<1x8x512xf32>
    %8 = vector.shape_cast %7 : vector<1x8x512xf32> to vector<8x512xf32>
    %9 = arith.truncf %4 : vector<8x128xf32> to vector<8x128xbf16>
    %cst = arith.constant dense<0.000000e+00> : vector<8x512xf32>
    %10 = tpu.matmul %9, %3, %cst {dimension_numbers = #tpu.dot_dimension_numbers<[1], [0], [0], [1], [0, 0, 1, 1], [], []>} : vector<8x128xbf16>, vector<128x512xbf16>, vector<8x512xf32> -> vector<8x512xf32>
    %11 = arith.addf %8, %10 : vector<8x512xf32>
    %12 = vector.extract_strided_slice %11 {offsets = [0, 0], sizes = [8, 128], strides = [1, 1]} : vector<8x512xf32> to vector<8x128xf32>
    %13 = arith.negf %12 : vector<8x128xf32>
    %14 = math.exp %13 : vector<8x128xf32>
    %cst_9 = arith.constant 1.000000e+00 : f32
    %15 = vector.broadcast %cst_9 : f32 to vector<8x128xf32>
    %16 = arith.addf %15, %14 : vector<8x128xf32>
    %17 = arith.divf %15, %16 : vector<8x128xf32>
    %18 = vector.extract_strided_slice %11 {offsets = [0, 128], sizes = [8, 128], strides = [1, 1]} : vector<8x512xf32> to vector<8x128xf32>
    %19 = arith.negf %18 : vector<8x128xf32>
    %20 = math.exp %19 : vector<8x128xf32>
    %cst_10 = arith.constant 1.000000e+00 : f32
    %21 = vector.broadcast %cst_10 : f32 to vector<8x128xf32>
    %22 = arith.addf %21, %20 : vector<8x128xf32>
    %23 = arith.divf %21, %22 : vector<8x128xf32>
    %24 = vector.extract_strided_slice %11 {offsets = [0, 256], sizes = [8, 128], strides = [1, 1]} : vector<8x512xf32> to vector<8x128xf32>
    %25 = math.tanh %24 : vector<8x128xf32>
    %26 = vector.extract_strided_slice %11 {offsets = [0, 384], sizes = [8, 128], strides = [1, 1]} : vector<8x512xf32> to vector<8x128xf32>
    %27 = arith.negf %26 : vector<8x128xf32>
    %28 = math.exp %27 : vector<8x128xf32>
    %cst_11 = arith.constant 1.000000e+00 : f32
    %29 = vector.broadcast %cst_11 : f32 to vector<8x128xf32>
    %30 = arith.addf %29, %28 : vector<8x128xf32>
    %31 = arith.divf %29, %30 : vector<8x128xf32>
    %32 = arith.mulf %23, %5 : vector<8x128xf32>
    %33 = arith.mulf %17, %25 : vector<8x128xf32>
    %34 = arith.addf %32, %33 : vector<8x128xf32>
    %35 = math.tanh %34 : vector<8x128xf32>
    %36 = arith.mulf %31, %35 : vector<8x128xf32>
    %c1_i32 = arith.constant 1 : i32
    %37 = arith.index_cast %c1_i32 : i32 to index
    %c0_12 = arith.constant 0 : index
    %c0_13 = arith.constant 0 : index
    %38 = vector.load %arg2[%37, %c0_12, %c0_13] : memref<8x8x512xf32, #tpu.memory_space<vmem>>, vector<1x8x512xf32>
    %39 = vector.shape_cast %38 : vector<1x8x512xf32> to vector<8x512xf32>
    %40 = arith.truncf %36 : vector<8x128xf32> to vector<8x128xbf16>
    %cst_14 = arith.constant dense<0.000000e+00> : vector<8x512xf32>
    %41 = tpu.matmul %40, %3, %cst_14 {dimension_numbers = #tpu.dot_dimension_numbers<[1], [0], [0], [1], [0, 0, 1, 1], [], []>} : vector<8x128xbf16>, vector<128x512xbf16>, vector<8x512xf32> -> vector<8x512xf32>
    %42 = arith.addf %39, %41 : vector<8x512xf32>
    %43 = vector.extract_strided_slice %42 {offsets = [0, 0], sizes = [8, 128], strides = [1, 1]} : vector<8x512xf32> to vector<8x128xf32>
    %44 = arith.negf %43 : vector<8x128xf32>
    %45 = math.exp %44 : vector<8x128xf32>
    %cst_15 = arith.constant 1.000000e+00 : f32
    %46 = vector.broadcast %cst_15 : f32 to vector<8x128xf32>
    %47 = arith.addf %46, %45 : vector<8x128xf32>
    %48 = arith.divf %46, %47 : vector<8x128xf32>
    %49 = vector.extract_strided_slice %42 {offsets = [0, 128], sizes = [8, 128], strides = [1, 1]} : vector<8x512xf32> to vector<8x128xf32>
    %50 = arith.negf %49 : vector<8x128xf32>
    %51 = math.exp %50 : vector<8x128xf32>
    %cst_16 = arith.constant 1.000000e+00 : f32
    %52 = vector.broadcast %cst_16 : f32 to vector<8x128xf32>
    %53 = arith.addf %52, %51 : vector<8x128xf32>
    %54 = arith.divf %52, %53 : vector<8x128xf32>
    %55 = vector.extract_strided_slice %42 {offsets = [0, 256], sizes = [8, 128], strides = [1, 1]} : vector<8x512xf32> to vector<8x128xf32>
    %56 = math.tanh %55 : vector<8x128xf32>
    %57 = vector.extract_strided_slice %42 {offsets = [0, 384], sizes = [8, 128], strides = [1, 1]} : vector<8x512xf32> to vector<8x128xf32>
    %58 = arith.negf %57 : vector<8x128xf32>
    %59 = math.exp %58 : vector<8x128xf32>
    %cst_17 = arith.constant 1.000000e+00 : f32
    %60 = vector.broadcast %cst_17 : f32 to vector<8x128xf32>
    %61 = arith.addf %60, %59 : vector<8x128xf32>
    %62 = arith.divf %60, %61 : vector<8x128xf32>
    %63 = arith.mulf %54, %34 : vector<8x128xf32>
    %64 = arith.mulf %48, %56 : vector<8x128xf32>
    %65 = arith.addf %63, %64 : vector<8x128xf32>
    %66 = math.tanh %65 : vector<8x128xf32>
    %67 = arith.mulf %62, %66 : vector<8x128xf32>
    %c2_i32 = arith.constant 2 : i32
    %68 = arith.index_cast %c2_i32 : i32 to index
    %c0_18 = arith.constant 0 : index
    %c0_19 = arith.constant 0 : index
    %69 = vector.load %arg2[%68, %c0_18, %c0_19] : memref<8x8x512xf32, #tpu.memory_space<vmem>>, vector<1x8x512xf32>
    %70 = vector.shape_cast %69 : vector<1x8x512xf32> to vector<8x512xf32>
    %71 = arith.truncf %67 : vector<8x128xf32> to vector<8x128xbf16>
    %cst_20 = arith.constant dense<0.000000e+00> : vector<8x512xf32>
    %72 = tpu.matmul %71, %3, %cst_20 {dimension_numbers = #tpu.dot_dimension_numbers<[1], [0], [0], [1], [0, 0, 1, 1], [], []>} : vector<8x128xbf16>, vector<128x512xbf16>, vector<8x512xf32> -> vector<8x512xf32>
    %73 = arith.addf %70, %72 : vector<8x512xf32>
    %74 = vector.extract_strided_slice %73 {offsets = [0, 0], sizes = [8, 128], strides = [1, 1]} : vector<8x512xf32> to vector<8x128xf32>
    %75 = arith.negf %74 : vector<8x128xf32>
    %76 = math.exp %75 : vector<8x128xf32>
    %cst_21 = arith.constant 1.000000e+00 : f32
    %77 = vector.broadcast %cst_21 : f32 to vector<8x128xf32>
    %78 = arith.addf %77, %76 : vector<8x128xf32>
    %79 = arith.divf %77, %78 : vector<8x128xf32>
    %80 = vector.extract_strided_slice %73 {offsets = [0, 128], sizes = [8, 128], strides = [1, 1]} : vector<8x512xf32> to vector<8x128xf32>
    %81 = arith.negf %80 : vector<8x128xf32>
    %82 = math.exp %81 : vector<8x128xf32>
    %cst_22 = arith.constant 1.000000e+00 : f32
    %83 = vector.broadcast %cst_22 : f32 to vector<8x128xf32>
    %84 = arith.addf %83, %82 : vector<8x128xf32>
    %85 = arith.divf %83, %84 : vector<8x128xf32>
    %86 = vector.extract_strided_slice %73 {offsets = [0, 256], sizes = [8, 128], strides = [1, 1]} : vector<8x512xf32> to vector<8x128xf32>
    %87 = math.tanh %86 : vector<8x128xf32>
    %88 = vector.extract_strided_slice %73 {offsets = [0, 384], sizes = [8, 128], strides = [1, 1]} : vector<8x512xf32> to vector<8x128xf32>
    %89 = arith.negf %88 : vector<8x128xf32>
    %90 = math.exp %89 : vector<8x128xf32>
    %cst_23 = arith.constant 1.000000e+00 : f32
    %91 = vector.broadcast %cst_23 : f32 to vector<8x128xf32>
    %92 = arith.addf %91, %90 : vector<8x128xf32>
    %93 = arith.divf %91, %92 : vector<8x128xf32>
    %94 = arith.mulf %85, %65 : vector<8x128xf32>
    %95 = arith.mulf %79, %87 : vector<8x128xf32>
    %96 = arith.addf %94, %95 : vector<8x128xf32>
    %97 = math.tanh %96 : vector<8x128xf32>
    %98 = arith.mulf %93, %97 : vector<8x128xf32>
    %c3_i32 = arith.constant 3 : i32
    %99 = arith.index_cast %c3_i32 : i32 to index
    %c0_24 = arith.constant 0 : index
    %c0_25 = arith.constant 0 : index
    %100 = vector.load %arg2[%99, %c0_24, %c0_25] : memref<8x8x512xf32, #tpu.memory_space<vmem>>, vector<1x8x512xf32>
    %101 = vector.shape_cast %100 : vector<1x8x512xf32> to vector<8x512xf32>
    %102 = arith.truncf %98 : vector<8x128xf32> to vector<8x128xbf16>
    %cst_26 = arith.constant dense<0.000000e+00> : vector<8x512xf32>
    %103 = tpu.matmul %102, %3, %cst_26 {dimension_numbers = #tpu.dot_dimension_numbers<[1], [0], [0], [1], [0, 0, 1, 1], [], []>} : vector<8x128xbf16>, vector<128x512xbf16>, vector<8x512xf32> -> vector<8x512xf32>
    %104 = arith.addf %101, %103 : vector<8x512xf32>
    %105 = vector.extract_strided_slice %104 {offsets = [0, 0], sizes = [8, 128], strides = [1, 1]} : vector<8x512xf32> to vector<8x128xf32>
    %106 = arith.negf %105 : vector<8x128xf32>
    %107 = math.exp %106 : vector<8x128xf32>
    %cst_27 = arith.constant 1.000000e+00 : f32
    %108 = vector.broadcast %cst_27 : f32 to vector<8x128xf32>
    %109 = arith.addf %108, %107 : vector<8x128xf32>
    %110 = arith.divf %108, %109 : vector<8x128xf32>
    %111 = vector.extract_strided_slice %104 {offsets = [0, 128], sizes = [8, 128], strides = [1, 1]} : vector<8x512xf32> to vector<8x128xf32>
    %112 = arith.negf %111 : vector<8x128xf32>
    %113 = math.exp %112 : vector<8x128xf32>
    %cst_28 = arith.constant 1.000000e+00 : f32
    %114 = vector.broadcast %cst_28 : f32 to vector<8x128xf32>
    %115 = arith.addf %114, %113 : vector<8x128xf32>
    %116 = arith.divf %114, %115 : vector<8x128xf32>
    %117 = vector.extract_strided_slice %104 {offsets = [0, 256], sizes = [8, 128], strides = [1, 1]} : vector<8x512xf32> to vector<8x128xf32>
    %118 = math.tanh %117 : vector<8x128xf32>
    %119 = vector.extract_strided_slice %104 {offsets = [0, 384], sizes = [8, 128], strides = [1, 1]} : vector<8x512xf32> to vector<8x128xf32>
    %120 = arith.negf %119 : vector<8x128xf32>
    %121 = math.exp %120 : vector<8x128xf32>
    %cst_29 = arith.constant 1.000000e+00 : f32
    %122 = vector.broadcast %cst_29 : f32 to vector<8x128xf32>
    %123 = arith.addf %122, %121 : vector<8x128xf32>
    %124 = arith.divf %122, %123 : vector<8x128xf32>
    %125 = arith.mulf %116, %96 : vector<8x128xf32>
    %126 = arith.mulf %110, %118 : vector<8x128xf32>
    %127 = arith.addf %125, %126 : vector<8x128xf32>
    %128 = math.tanh %127 : vector<8x128xf32>
    %129 = arith.mulf %124, %128 : vector<8x128xf32>
    %c4_i32 = arith.constant 4 : i32
    %130 = arith.index_cast %c4_i32 : i32 to index
    %c0_30 = arith.constant 0 : index
    %c0_31 = arith.constant 0 : index
    %131 = vector.load %arg2[%130, %c0_30, %c0_31] : memref<8x8x512xf32, #tpu.memory_space<vmem>>, vector<1x8x512xf32>
    %132 = vector.shape_cast %131 : vector<1x8x512xf32> to vector<8x512xf32>
    %133 = arith.truncf %129 : vector<8x128xf32> to vector<8x128xbf16>
    %cst_32 = arith.constant dense<0.000000e+00> : vector<8x512xf32>
    %134 = tpu.matmul %133, %3, %cst_32 {dimension_numbers = #tpu.dot_dimension_numbers<[1], [0], [0], [1], [0, 0, 1, 1], [], []>} : vector<8x128xbf16>, vector<128x512xbf16>, vector<8x512xf32> -> vector<8x512xf32>
    %135 = arith.addf %132, %134 : vector<8x512xf32>
    %136 = vector.extract_strided_slice %135 {offsets = [0, 0], sizes = [8, 128], strides = [1, 1]} : vector<8x512xf32> to vector<8x128xf32>
    %137 = arith.negf %136 : vector<8x128xf32>
    %138 = math.exp %137 : vector<8x128xf32>
    %cst_33 = arith.constant 1.000000e+00 : f32
    %139 = vector.broadcast %cst_33 : f32 to vector<8x128xf32>
    %140 = arith.addf %139, %138 : vector<8x128xf32>
    %141 = arith.divf %139, %140 : vector<8x128xf32>
    %142 = vector.extract_strided_slice %135 {offsets = [0, 128], sizes = [8, 128], strides = [1, 1]} : vector<8x512xf32> to vector<8x128xf32>
    %143 = arith.negf %142 : vector<8x128xf32>
    %144 = math.exp %143 : vector<8x128xf32>
    %cst_34 = arith.constant 1.000000e+00 : f32
    %145 = vector.broadcast %cst_34 : f32 to vector<8x128xf32>
    %146 = arith.addf %145, %144 : vector<8x128xf32>
    %147 = arith.divf %145, %146 : vector<8x128xf32>
    %148 = vector.extract_strided_slice %135 {offsets = [0, 256], sizes = [8, 128], strides = [1, 1]} : vector<8x512xf32> to vector<8x128xf32>
    %149 = math.tanh %148 : vector<8x128xf32>
    %150 = vector.extract_strided_slice %135 {offsets = [0, 384], sizes = [8, 128], strides = [1, 1]} : vector<8x512xf32> to vector<8x128xf32>
    %151 = arith.negf %150 : vector<8x128xf32>
    %152 = math.exp %151 : vector<8x128xf32>
    %cst_35 = arith.constant 1.000000e+00 : f32
    %153 = vector.broadcast %cst_35 : f32 to vector<8x128xf32>
    %154 = arith.addf %153, %152 : vector<8x128xf32>
    %155 = arith.divf %153, %154 : vector<8x128xf32>
    %156 = arith.mulf %147, %127 : vector<8x128xf32>
    %157 = arith.mulf %141, %149 : vector<8x128xf32>
    %158 = arith.addf %156, %157 : vector<8x128xf32>
    %159 = math.tanh %158 : vector<8x128xf32>
    %160 = arith.mulf %155, %159 : vector<8x128xf32>
    %c5_i32 = arith.constant 5 : i32
    %161 = arith.index_cast %c5_i32 : i32 to index
    %c0_36 = arith.constant 0 : index
    %c0_37 = arith.constant 0 : index
    %162 = vector.load %arg2[%161, %c0_36, %c0_37] : memref<8x8x512xf32, #tpu.memory_space<vmem>>, vector<1x8x512xf32>
    %163 = vector.shape_cast %162 : vector<1x8x512xf32> to vector<8x512xf32>
    %164 = arith.truncf %160 : vector<8x128xf32> to vector<8x128xbf16>
    %cst_38 = arith.constant dense<0.000000e+00> : vector<8x512xf32>
    %165 = tpu.matmul %164, %3, %cst_38 {dimension_numbers = #tpu.dot_dimension_numbers<[1], [0], [0], [1], [0, 0, 1, 1], [], []>} : vector<8x128xbf16>, vector<128x512xbf16>, vector<8x512xf32> -> vector<8x512xf32>
    %166 = arith.addf %163, %165 : vector<8x512xf32>
    %167 = vector.extract_strided_slice %166 {offsets = [0, 0], sizes = [8, 128], strides = [1, 1]} : vector<8x512xf32> to vector<8x128xf32>
    %168 = arith.negf %167 : vector<8x128xf32>
    %169 = math.exp %168 : vector<8x128xf32>
    %cst_39 = arith.constant 1.000000e+00 : f32
    %170 = vector.broadcast %cst_39 : f32 to vector<8x128xf32>
    %171 = arith.addf %170, %169 : vector<8x128xf32>
    %172 = arith.divf %170, %171 : vector<8x128xf32>
    %173 = vector.extract_strided_slice %166 {offsets = [0, 128], sizes = [8, 128], strides = [1, 1]} : vector<8x512xf32> to vector<8x128xf32>
    %174 = arith.negf %173 : vector<8x128xf32>
    %175 = math.exp %174 : vector<8x128xf32>
    %cst_40 = arith.constant 1.000000e+00 : f32
    %176 = vector.broadcast %cst_40 : f32 to vector<8x128xf32>
    %177 = arith.addf %176, %175 : vector<8x128xf32>
    %178 = arith.divf %176, %177 : vector<8x128xf32>
    %179 = vector.extract_strided_slice %166 {offsets = [0, 256], sizes = [8, 128], strides = [1, 1]} : vector<8x512xf32> to vector<8x128xf32>
    %180 = math.tanh %179 : vector<8x128xf32>
    %181 = vector.extract_strided_slice %166 {offsets = [0, 384], sizes = [8, 128], strides = [1, 1]} : vector<8x512xf32> to vector<8x128xf32>
    %182 = arith.negf %181 : vector<8x128xf32>
    %183 = math.exp %182 : vector<8x128xf32>
    %cst_41 = arith.constant 1.000000e+00 : f32
    %184 = vector.broadcast %cst_41 : f32 to vector<8x128xf32>
    %185 = arith.addf %184, %183 : vector<8x128xf32>
    %186 = arith.divf %184, %185 : vector<8x128xf32>
    %187 = arith.mulf %178, %158 : vector<8x128xf32>
    %188 = arith.mulf %172, %180 : vector<8x128xf32>
    %189 = arith.addf %187, %188 : vector<8x128xf32>
    %190 = math.tanh %189 : vector<8x128xf32>
    %191 = arith.mulf %186, %190 : vector<8x128xf32>
    %c6_i32 = arith.constant 6 : i32
    %192 = arith.index_cast %c6_i32 : i32 to index
    %c0_42 = arith.constant 0 : index
    %c0_43 = arith.constant 0 : index
    %193 = vector.load %arg2[%192, %c0_42, %c0_43] : memref<8x8x512xf32, #tpu.memory_space<vmem>>, vector<1x8x512xf32>
    %194 = vector.shape_cast %193 : vector<1x8x512xf32> to vector<8x512xf32>
    %195 = arith.truncf %191 : vector<8x128xf32> to vector<8x128xbf16>
    %cst_44 = arith.constant dense<0.000000e+00> : vector<8x512xf32>
    %196 = tpu.matmul %195, %3, %cst_44 {dimension_numbers = #tpu.dot_dimension_numbers<[1], [0], [0], [1], [0, 0, 1, 1], [], []>} : vector<8x128xbf16>, vector<128x512xbf16>, vector<8x512xf32> -> vector<8x512xf32>
    %197 = arith.addf %194, %196 : vector<8x512xf32>
    %198 = vector.extract_strided_slice %197 {offsets = [0, 0], sizes = [8, 128], strides = [1, 1]} : vector<8x512xf32> to vector<8x128xf32>
    %199 = arith.negf %198 : vector<8x128xf32>
    %200 = math.exp %199 : vector<8x128xf32>
    %cst_45 = arith.constant 1.000000e+00 : f32
    %201 = vector.broadcast %cst_45 : f32 to vector<8x128xf32>
    %202 = arith.addf %201, %200 : vector<8x128xf32>
    %203 = arith.divf %201, %202 : vector<8x128xf32>
    %204 = vector.extract_strided_slice %197 {offsets = [0, 128], sizes = [8, 128], strides = [1, 1]} : vector<8x512xf32> to vector<8x128xf32>
    %205 = arith.negf %204 : vector<8x128xf32>
    %206 = math.exp %205 : vector<8x128xf32>
    %cst_46 = arith.constant 1.000000e+00 : f32
    %207 = vector.broadcast %cst_46 : f32 to vector<8x128xf32>
    %208 = arith.addf %207, %206 : vector<8x128xf32>
    %209 = arith.divf %207, %208 : vector<8x128xf32>
    %210 = vector.extract_strided_slice %197 {offsets = [0, 256], sizes = [8, 128], strides = [1, 1]} : vector<8x512xf32> to vector<8x128xf32>
    %211 = math.tanh %210 : vector<8x128xf32>
    %212 = vector.extract_strided_slice %197 {offsets = [0, 384], sizes = [8, 128], strides = [1, 1]} : vector<8x512xf32> to vector<8x128xf32>
    %213 = arith.negf %212 : vector<8x128xf32>
    %214 = math.exp %213 : vector<8x128xf32>
    %cst_47 = arith.constant 1.000000e+00 : f32
    %215 = vector.broadcast %cst_47 : f32 to vector<8x128xf32>
    %216 = arith.addf %215, %214 : vector<8x128xf32>
    %217 = arith.divf %215, %216 : vector<8x128xf32>
    %218 = arith.mulf %209, %189 : vector<8x128xf32>
    %219 = arith.mulf %203, %211 : vector<8x128xf32>
    %220 = arith.addf %218, %219 : vector<8x128xf32>
    %221 = math.tanh %220 : vector<8x128xf32>
    %222 = arith.mulf %217, %221 : vector<8x128xf32>
    %c7_i32 = arith.constant 7 : i32
    %223 = arith.index_cast %c7_i32 : i32 to index
    %c0_48 = arith.constant 0 : index
    %c0_49 = arith.constant 0 : index
    %224 = vector.load %arg2[%223, %c0_48, %c0_49] : memref<8x8x512xf32, #tpu.memory_space<vmem>>, vector<1x8x512xf32>
    %225 = vector.shape_cast %224 : vector<1x8x512xf32> to vector<8x512xf32>
    %226 = arith.truncf %222 : vector<8x128xf32> to vector<8x128xbf16>
    %cst_50 = arith.constant dense<0.000000e+00> : vector<8x512xf32>
    %227 = tpu.matmul %226, %3, %cst_50 {dimension_numbers = #tpu.dot_dimension_numbers<[1], [0], [0], [1], [0, 0, 1, 1], [], []>} : vector<8x128xbf16>, vector<128x512xbf16>, vector<8x512xf32> -> vector<8x512xf32>
    %228 = arith.addf %225, %227 : vector<8x512xf32>
    %229 = vector.extract_strided_slice %228 {offsets = [0, 0], sizes = [8, 128], strides = [1, 1]} : vector<8x512xf32> to vector<8x128xf32>
    %230 = arith.negf %229 : vector<8x128xf32>
    %231 = math.exp %230 : vector<8x128xf32>
    %cst_51 = arith.constant 1.000000e+00 : f32
    %232 = vector.broadcast %cst_51 : f32 to vector<8x128xf32>
    %233 = arith.addf %232, %231 : vector<8x128xf32>
    %234 = arith.divf %232, %233 : vector<8x128xf32>
    %235 = vector.extract_strided_slice %228 {offsets = [0, 128], sizes = [8, 128], strides = [1, 1]} : vector<8x512xf32> to vector<8x128xf32>
    %236 = arith.negf %235 : vector<8x128xf32>
    %237 = math.exp %236 : vector<8x128xf32>
    %cst_52 = arith.constant 1.000000e+00 : f32
    %238 = vector.broadcast %cst_52 : f32 to vector<8x128xf32>
    %239 = arith.addf %238, %237 : vector<8x128xf32>
    %240 = arith.divf %238, %239 : vector<8x128xf32>
    %241 = vector.extract_strided_slice %228 {offsets = [0, 256], sizes = [8, 128], strides = [1, 1]} : vector<8x512xf32> to vector<8x128xf32>
    %242 = math.tanh %241 : vector<8x128xf32>
    %243 = vector.extract_strided_slice %228 {offsets = [0, 384], sizes = [8, 128], strides = [1, 1]} : vector<8x512xf32> to vector<8x128xf32>
    %244 = arith.negf %243 : vector<8x128xf32>
    %245 = math.exp %244 : vector<8x128xf32>
    %cst_53 = arith.constant 1.000000e+00 : f32
    %246 = vector.broadcast %cst_53 : f32 to vector<8x128xf32>
    %247 = arith.addf %246, %245 : vector<8x128xf32>
    %248 = arith.divf %246, %247 : vector<8x128xf32>
    %249 = arith.mulf %240, %220 : vector<8x128xf32>
    %250 = arith.mulf %234, %242 : vector<8x128xf32>
    %251 = arith.addf %249, %250 : vector<8x128xf32>
    %252 = math.tanh %251 : vector<8x128xf32>
    %253 = arith.mulf %248, %252 : vector<8x128xf32>
    %c8_i32 = arith.constant 8 : i32
    %c0_54 = arith.constant 0 : index
    %c0_55 = arith.constant 0 : index
    %254 = vector.load %arg5[%c0_54, %c0_55] : memref<8x128xf32, #tpu.memory_space<vmem>>, vector<8x128xf32>
    tpu.vector_store %arg5[%c0_54, %c0_55], %253 {strides = array<i32>} : memref<8x128xf32, #tpu.memory_space<vmem>>, vector<8x128xf32>,
    %c0_56 = arith.constant 0 : index
    %c0_57 = arith.constant 0 : index
    %255 = vector.load %arg6[%c0_56, %c0_57] : memref<8x128xf32, #tpu.memory_space<vmem>>, vector<8x128xf32>
    tpu.vector_store %arg6[%c0_56, %c0_57], %251 {strides = array<i32>} : memref<8x128xf32, #tpu.memory_space<vmem>>, vector<8x128xf32>,
    %c0_i32_58 = arith.constant 0 : i32
    %256 = arith.cmpi eq, %arg1, %c0_i32_58 : i32
    %257 = arith.extui %256 : i1 to i32
    %c0_i32_59 = arith.constant 0 : i32
    %258 = arith.cmpi ne, %257, %c0_i32_59 : i32
    scf.if %258 {
      %c0_60 = arith.constant 0 : index
      %c0_61 = arith.constant 0 : index
      %259 = vector.load %arg4[%c0_60, %c0_61] : memref<8x128xf32, #tpu.memory_space<vmem>>, vector<8x128xf32>
      tpu.vector_store %arg4[%c0_60, %c0_61], %253 {strides = array<i32>} : memref<8x128xf32, #tpu.memory_space<vmem>>, vector<8x128xf32>,
    } else {
    }
    return
  }
  func.func @transform_0(%arg0: i32, %arg1: i32) -> (i32, i32, i32) {
    %c0_i32 = arith.constant 0 : i32
    %c0_i32_0 = arith.constant 0 : i32
    return %arg1, %arg0, %c0_i32 : i32, i32, i32
  }
  func.func @transform_1(%arg0: i32, %arg1: i32) -> (i32, i32) {
    %c0_i32 = arith.constant 0 : i32
    %c0_i32_0 = arith.constant 0 : i32
    %c0_i32_1 = arith.constant 0 : i32
    return %c0_i32, %c0_i32_0 : i32, i32
  }
  func.func @transform_2(%arg0: i32, %arg1: i32) -> (i32, i32) {
    %c0_i32 = arith.constant 0 : i32
    %c0_i32_0 = arith.constant 0 : i32
    return %arg0, %c0_i32 : i32, i32
  }
}

</mosaic_0001>

<llo_original>
// kernel: rnn_forward.1
$region0: #{rnn_forward.1}
  #allocation0 [shape = 'u32[]', space=smem, size = 0x4, offset = 0x4, fixed_abs, tag = 'smem constant byte address 0x4 - core index']
  #allocation1 [shape = 'u32[144,128]{1,0:T(1,128)}', space=vmem, size = 0x12000, scoped, tag = 'internal scratch']
  #allocation2 [shape = 'f32[8,128]{1,0:T(8,128)}', space=vmem, size = 0x1000, scoped, tag = 'scratch operand']
  #allocation3 [shape = 'f32[8,128]{1,0:T(8,128)}', space=vmem, size = 0x1000, scoped, tag = 'scratch operand']
  %s0 = inlined_call_operand.vmem [shape: f32[8,8,512], index: 0, kind: input, shape index: {}]
  %s1 = inlined_call_operand.vmem [shape: bf16[128,512], index: 1, kind: input, shape index: {}]
  %s2 = inlined_call_operand.vmem [shape: f32[8,128], index: 2, kind: output, shape index: {}]
  %s3 = sld [smem:[#allocation0]]
  $region26: #{rnn_forward.1} parent=0
    _
  %s5 = ssub.s32 1, %s3
  %s6 = scalar_select 0, %s5, %s3
  // Predicated region
  $region2: #{rnn_forward.1} parent=0 // pred_check
    _
  $region3: #{rnn_forward.1} parent=0 // pred_check_branch
    %8 = sbr.rel (0) target = $region5
  $region4: #{rnn_forward.1} parent=0 // pred_region
    _
  $region5: #{rnn_forward.1} parent=0 // pred_fallthru
    _
  // Predicated region
  $region6: #{rnn_forward.1} parent=0 // pred_check
    _
  $region7: #{rnn_forward.1} parent=0 // pred_check_branch
    %10 = sbr.rel (0) target = $region9
  $region8: #{rnn_forward.1} parent=0 // pred_region
    _
  $region9: #{rnn_forward.1} parent=0 // pred_fallthru
    _
  %p12 = scmp.eq.s32.totalorder 0, 0
  // Predicated region
  $region10: #{rnn_forward.1} parent=0 // pred_check
    %p13 = pneg %p12
  $region11: #{rnn_forward.1} parent=0 // pred_check_branch
    %15 = sbr.rel (%p13) target = $region13
  $region12: #{rnn_forward.1} parent=0 // pred_region
    %16 = vst [vmem:[#allocation2] sm:$0xff] 0.0
    %17 = vst [vmem:[#allocation3] sm:$0xff] 0.0
  $region13: #{rnn_forward.1} parent=0 // pred_fallthru
    _
  %v18 = vld [vmem:[%s1] sm:$0xff]
  %v19 = vld [vmem:[%s1 + $0x8] sm:$0xff]
  %v20 = vld [vmem:[%s1 + $0x10] sm:$0xff]
  %v21 = vld [vmem:[%s1 + $0x18] sm:$0xff]
  %v22 = vld [vmem:[%s1 + $0x20] sm:$0xff]
  %v23 = vld [vmem:[%s1 + $0x28] sm:$0xff]
  %v24 = vld [vmem:[%s1 + $0x30] sm:$0xff]
  %v25 = vld [vmem:[%s1 + $0x38] sm:$0xff]
  %v26 = vld [vmem:[%s1 + $0x40] sm:$0xff]
  %v27 = vld [vmem:[%s1 + $0x48] sm:$0xff]
  %v28 = vld [vmem:[%s1 + $0x50] sm:$0xff]
  %v29 = vld [vmem:[%s1 + $0x58] sm:$0xff]
  %v30 = vld [vmem:[%s1 + $0x60] sm:$0xff]
  %v31 = vld [vmem:[%s1 + $0x68] sm:$0xff]
  %v32 = vld [vmem:[%s1 + $0x70] sm:$0xff]
  %v33 = vld [vmem:[%s1 + $0x78] sm:$0xff]
  %v34 = vld [vmem:[%s1 + $0x80] sm:$0xff]
  %v35 = vld [vmem:[%s1 + $0x88] sm:$0xff]
  %v36 = vld [vmem:[%s1 + $0x90] sm:$0xff]
  %v37 = vld [vmem:[%s1 + $0x98] sm:$0xff]
  %v38 = vld [vmem:[%s1 + $0xa0] sm:$0xff]
  %v39 = vld [vmem:[%s1 + $0xa8] sm:$0xff]
  %v40 = vld [vmem:[%s1 + $0xb0] sm:$0xff]
  %v41 = vld [vmem:[%s1 + $0xb8] sm:$0xff]
  %v42 = vld [vmem:[%s1 + $0xc0] sm:$0xff]
  %v43 = vld [vmem:[%s1 + $0xc8] sm:$0xff]
  %v44 = vld [vmem:[%s1 + $0xd0] sm:$0xff]
  %v45 = vld [vmem:[%s1 + $0xd8] sm:$0xff]
  %v46 = vld [vmem:[%s1 + $0xe0] sm:$0xff]
  %v47 = vld [vmem:[%s1 + $0xe8] sm:$0xff]
  %v48 = vld [vmem:[%s1 + $0xf0] sm:$0xff]
  %v49 = vld [vmem:[%s1 + $0xf8] sm:$0xff]
  %v50 = vld [vmem:[#allocation2] sm:$0xff]
  %v51 = vld [vmem:[#allocation3] sm:$0xff]
  %v52 = vld [vmem:[%s0] sm:$0xff]
  %v53 = vld [vmem:[%s0 + $0x8] sm:$0xff]
  %v54 = vld [vmem:[%s0 + $0x10] sm:$0xff]
  %v55 = vld [vmem:[%s0 + $0x18] sm:$0xff]
  %v56 = vpack.c.bf16 %v50, %v50
  %v89 = vunpack.c.l.b16 %v18
  %v90 = vunpack.c.h.b16 %v18
  %v91 = vunpack.c.l.b16 %v19
  %v92 = vunpack.c.h.b16 %v19
  %v93 = vunpack.c.l.b16 %v20
  %v94 = vunpack.c.h.b16 %v20
  %v95 = vunpack.c.l.b16 %v21
  %v96 = vunpack.c.h.b16 %v21
  %v97 = vunpack.c.l.b16 %v22
  %v98 = vunpack.c.h.b16 %v22
  %v99 = vunpack.c.l.b16 %v23
  %v100 = vunpack.c.h.b16 %v23
  %v101 = vunpack.c.l.b16 %v24
  %v102 = vunpack.c.h.b16 %v24
  %v103 = vunpack.c.l.b16 %v25
  %v104 = vunpack.c.h.b16 %v25
  %v105 = vunpack.c.l.b16 %v26
  %v106 = vunpack.c.h.b16 %v26
  %v107 = vunpack.c.l.b16 %v27
  %v108 = vunpack.c.h.b16 %v27
  %v109 = vunpack.c.l.b16 %v28
  %v110 = vunpack.c.h.b16 %v28
  %v111 = vunpack.c.l.b16 %v29
  %v112 = vunpack.c.h.b16 %v29
  %v113 = vunpack.c.l.b16 %v30
  %v114 = vunpack.c.h.b16 %v30
  %v115 = vunpack.c.l.b16 %v31
  %v116 = vunpack.c.h.b16 %v31
  %v117 = vunpack.c.l.b16 %v32
  %v118 = vunpack.c.h.b16 %v32
  %v119 = vunpack.c.l.b16 %v33
  %v120 = vunpack.c.h.b16 %v33
  %v121 = vunpack.c.l.b16 %v34
  %v122 = vunpack.c.h.b16 %v34
  %v123 = vunpack.c.l.b16 %v35
  %v124 = vunpack.c.h.b16 %v35
  %v125 = vunpack.c.l.b16 %v36
  %v126 = vunpack.c.h.b16 %v36
  %v127 = vunpack.c.l.b16 %v37
  %v128 = vunpack.c.h.b16 %v37
  %v129 = vunpack.c.l.b16 %v38
  %v130 = vunpack.c.h.b16 %v38
  %v131 = vunpack.c.l.b16 %v39
  %v132 = vunpack.c.h.b16 %v39
  %v133 = vunpack.c.l.b16 %v40
  %v134 = vunpack.c.h.b16 %v40
  %v135 = vunpack.c.l.b16 %v41
  %v136 = vunpack.c.h.b16 %v41
  %v137 = vunpack.c.l.b16 %v42
  %v138 = vunpack.c.h.b16 %v42
  %v139 = vunpack.c.l.b16 %v43
  %v140 = vunpack.c.h.b16 %v43
  %v141 = vunpack.c.l.b16 %v44
  %v142 = vunpack.c.h.b16 %v44
  %v143 = vunpack.c.l.b16 %v45
  %v144 = vunpack.c.h.b16 %v45
  %v145 = vunpack.c.l.b16 %v46
  %v146 = vunpack.c.h.b16 %v46
  %v147 = vunpack.c.l.b16 %v47
  %v148 = vunpack.c.h.b16 %v47
  %v149 = vunpack.c.l.b16 %v48
  %v150 = vunpack.c.h.b16 %v48
  %v151 = vunpack.c.l.b16 %v49
  %v152 = vunpack.c.h.b16 %v49
  %v153 = vpack.c.b16 %v93, %v89
  %v154 = vpack.c.b16 %v94, %v90
  %v155 = vpack.c.b16 %v95, %v91
  %v156 = vpack.c.b16 %v96, %v92
  %v157 = vpack.c.b16 %v101, %v97
  %v158 = vpack.c.b16 %v102, %v98
  %v159 = vpack.c.b16 %v103, %v99
  %v160 = vpack.c.b16 %v104, %v100
  %v161 = vpack.c.b16 %v109, %v105
  %v162 = vpack.c.b16 %v110, %v106
  %v163 = vpack.c.b16 %v111, %v107
  %v164 = vpack.c.b16 %v112, %v108
  %v165 = vpack.c.b16 %v117, %v113
  %v166 = vpack.c.b16 %v118, %v114
  %v167 = vpack.c.b16 %v119, %v115
  %v168 = vpack.c.b16 %v120, %v116
  %v169 = vpack.c.b16 %v125, %v121
  %v170 = vpack.c.b16 %v126, %v122
  %v171 = vpack.c.b16 %v127, %v123
  %v172 = vpack.c.b16 %v128, %v124
  %v173 = vpack.c.b16 %v133, %v129
  %v174 = vpack.c.b16 %v134, %v130
  %v175 = vpack.c.b16 %v135, %v131
  %v176 = vpack.c.b16 %v136, %v132
  %v177 = vpack.c.b16 %v141, %v137
  %v178 = vpack.c.b16 %v142, %v138
  %v179 = vpack.c.b16 %v143, %v139
  %v180 = vpack.c.b16 %v144, %v140
  %v181 = vpack.c.b16 %v149, %v145
  %v182 = vpack.c.b16 %v150, %v146
  %v183 = vpack.c.b16 %v151, %v147
  %v184 = vpack.c.b16 %v152, %v148
  %217 = vmatprep.subr.bf16.mxu0 %v182
  %218 = vmatpush1.bf16.msra.mxu0 %v181
  %219 = vmatprep.subr.bf16.mxu0 %v178
  %220 = vmatpush1.bf16.msra.mxu0 %v177
  %221 = vmatprep.subr.bf16.mxu0 %v174
  %222 = vmatpush1.bf16.msra.mxu0 %v173
  %223 = vmatprep.subr.bf16.mxu0 %v170
  %224 = vmatpush1.bf16.msra.mxu0 %v169
  %225 = vmatprep.subr.bf16.mxu0 %v166
  %226 = vmatpush1.bf16.msra.mxu0 %v165
  %227 = vmatprep.subr.bf16.mxu0 %v162
  %228 = vmatpush1.bf16.msra.mxu0 %v161
  %229 = vmatprep.subr.bf16.mxu0 %v158
  %230 = vmatpush1.bf16.msra.mxu0 %v157
  %231 = vmatprep.subr.bf16.mxu0 %v154
  %232 = vmatpush1.bf16.msra.mxu0 %v153
  %233 = vmatprep.subr.bf16.mxu0 0
  %234 = vmatpush2.bf16.msra.mxu0 0
  %235 = vmatprep.subr.bf16.mxu0 0
  %236 = vmatpush2.bf16.msra.mxu0 0
  %237 = vmatprep.subr.bf16.mxu0 0
  %238 = vmatpush2.bf16.msra.mxu0 0
  %239 = vmatprep.subr.bf16.mxu0 0
  %240 = vmatpush2.bf16.msra.mxu0 0
  %241 = vmatprep.subr.bf16.mxu0 0
  %242 = vmatpush2.bf16.msra.mxu0 0
  %243 = vmatprep.subr.bf16.mxu0 0
  %244 = vmatpush2.bf16.msra.mxu0 0
  %245 = vmatprep.subr.bf16.mxu0 0
  %246 = vmatpush2.bf16.msra.mxu0 0
  %247 = vmatprep.subr.bf16.mxu0 0
  %248 = vmatpush2.bf16.msra.mxu0 0
  %249 = vmatprep.mubr.bf16.mxu0 0
  %250 = vmatmul.mubr.bf16.gmra.mxu0 %v56
  %v251 = vpop.f32.mrf.mxu0
  %v252 = vadd.f32 0.0, %v251
  %v253 = vpop.f32.mrf.mxu0
  %v254 = vadd.f32 0.0, %v253
  %v255 = vpop.f32.mrf.mxu0
  %v256 = vpop.f32.mrf.mxu0
  %257 = vdwg.mxu0
  %258 = vmatprep.subr.bf16.mxu0 %v184
  %259 = vmatpush1.bf16.msra.mxu0 %v183
  %260 = vmatprep.subr.bf16.mxu0 %v180
  %261 = vmatpush1.bf16.msra.mxu0 %v179
  %262 = vmatprep.subr.bf16.mxu0 %v176
  %263 = vmatpush1.bf16.msra.mxu0 %v175
  %264 = vmatprep.subr.bf16.mxu0 %v172
  %265 = vmatpush1.bf16.msra.mxu0 %v171
  %266 = vmatprep.subr.bf16.mxu0 %v168
  %267 = vmatpush1.bf16.msra.mxu0 %v167
  %268 = vmatprep.subr.bf16.mxu0 %v164
  %269 = vmatpush1.bf16.msra.mxu0 %v163
  %270 = vmatprep.subr.bf16.mxu0 %v160
  %271 = vmatpush1.bf16.msra.mxu0 %v159
  %272 = vmatprep.subr.bf16.mxu0 %v156
  %273 = vmatpush1.bf16.msra.mxu0 %v155
  %274 = vmatprep.subr.bf16.mxu0 0
  %275 = vmatpush2.bf16.msra.mxu0 0
  %276 = vmatprep.subr.bf16.mxu0 0
  %277 = vmatpush2.bf16.msra.mxu0 0
  %278 = vmatprep.subr.bf16.mxu0 0
  %279 = vmatpush2.bf16.msra.mxu0 0
  %280 = vmatprep.subr.bf16.mxu0 0
  %281 = vmatpush2.bf16.msra.mxu0 0
  %282 = vmatprep.subr.bf16.mxu0 0
  %283 = vmatpush2.bf16.msra.mxu0 0
  %284 = vmatprep.subr.bf16.mxu0 0
  %285 = vmatpush2.bf16.msra.mxu0 0
  %286 = vmatprep.subr.bf16.mxu0 0
  %287 = vmatpush2.bf16.msra.mxu0 0
  %288 = vmatprep.subr.bf16.mxu0 0
  %289 = vmatpush2.bf16.msra.mxu0 0
  %290 = vmatprep.mubr.bf16.mxu0 0
  %291 = vmatmul.mubr.bf16.gmra.mxu0 %v56
  %v292 = vpop.f32.mrf.mxu0
  %v293 = vadd.f32 0.0, %v292
  %v294 = vpop.f32.mrf.mxu0
  %v295 = vadd.f32 0.0, %v294
  %v296 = vpop.f32.mrf.mxu0
  %v297 = vpop.f32.mrf.mxu0
  %298 = vdwg.mxu0
  %v299 = vadd.f32 %v52, %v252
  %v300 = vadd.f32 %v53, %v254
  %v301 = vadd.f32 %v54, %v293
  %v302 = vadd.f32 %v55, %v295
  %v303 = vxor.u32 %v299, 2147483648
  %v304 = vmul.f32 %v303, 1.442695
  %v305 = vpow.pop %v304
  %v306 = vadd.f32 %v305, 1.0
  %v307 = vrcp.pop %v306
  %v308 = vmul.f32 1.0, %v307
  %v309 = vxor.u32 %v300, 2147483648
  %v310 = vmul.f32 %v309, 1.442695
  %v311 = vpow.pop %v310
  %v312 = vadd.f32 %v311, 1.0
  %v313 = vrcp.pop %v312
  %v314 = vmul.f32 1.0, %v313
  %v315 = vtanh.pop %v301
  %v316 = vxor.u32 %v302, 2147483648
  %v317 = vmul.f32 %v316, 1.442695
  %v318 = vpow.pop %v317
  %v319 = vadd.f32 %v318, 1.0
  %v320 = vrcp.pop %v319
  %v321 = vmul.f32 1.0, %v320
  %v322 = vmul.f32 %v314, %v51
  %v323 = vmul.f32 %v308, %v315
  %v324 = vadd.f32 %v322, %v323
  %v325 = vtanh.pop %v324
  %v326 = vmul.f32 %v321, %v325
  %s327 = scalar_lea.vmem %s0, 32
  %v328 = vld [vmem:[%s327] sm:$0xff]
  %v329 = vld [vmem:[%s327 + $0x8] sm:$0xff]
  %v330 = vld [vmem:[%s327 + $0x10] sm:$0xff]
  %v331 = vld [vmem:[%s327 + $0x18] sm:$0xff]
  %v332 = vpack.c.bf16 %v326, %v326
  %333 = vmatprep.subr.bf16.mxu0 %v182
  %334 = vmatpush1.bf16.msra.mxu0 %v181
  %335 = vmatprep.subr.bf16.mxu0 %v178
  %336 = vmatpush1.bf16.msra.mxu0 %v177
  %337 = vmatprep.subr.bf16.mxu0 %v174
  %338 = vmatpush1.bf16.msra.mxu0 %v173
  %339 = vmatprep.subr.bf16.mxu0 %v170
  %340 = vmatpush1.bf16.msra.mxu0 %v169
  %341 = vmatprep.subr.bf16.mxu0 %v166
  %342 = vmatpush1.bf16.msra.mxu0 %v165
  %343 = vmatprep.subr.bf16.mxu0 %v162
  %344 = vmatpush1.bf16.msra.mxu0 %v161
  %345 = vmatprep.subr.bf16.mxu0 %v158
  %346 = vmatpush1.bf16.msra.mxu0 %v157
  %347 = vmatprep.subr.bf16.mxu0 %v154
  %348 = vmatpush1.bf16.msra.mxu0 %v153
  %349 = vmatprep.subr.bf16.mxu0 0
  %350 = vmatpush2.bf16.msra.mxu0 0
  %351 = vmatprep.subr.bf16.mxu0 0
  %352 = vmatpush2.bf16.msra.mxu0 0
  %353 = vmatprep.subr.bf16.mxu0 0
  %354 = vmatpush2.bf16.msra.mxu0 0
  %355 = vmatprep.subr.bf16.mxu0 0
  %356 = vmatpush2.bf16.msra.mxu0 0
  %357 = vmatprep.subr.bf16.mxu0 0
  %358 = vmatpush2.bf16.msra.mxu0 0
  %359 = vmatprep.subr.bf16.mxu0 0
  %360 = vmatpush2.bf16.msra.mxu0 0
  %361 = vmatprep.subr.bf16.mxu0 0
  %362 = vmatpush2.bf16.msra.mxu0 0
  %363 = vmatprep.subr.bf16.mxu0 0
  %364 = vmatpush2.bf16.msra.mxu0 0
  %365 = vmatprep.mubr.bf16.mxu0 0
  %366 = vmatmul.mubr.bf16.gmra.mxu0 %v332
  %v367 = vpop.f32.mrf.mxu0
  %v368 = vadd.f32 0.0, %v367
  %v369 = vpop.f32.mrf.mxu0
  %v370 = vadd.f32 0.0, %v369
  %v371 = vpop.f32.mrf.mxu0
  %v372 = vpop.f32.mrf.mxu0
  %373 = vdwg.mxu0
  %374 = vmatprep.subr.bf16.mxu0 %v184
  %375 = vmatpush1.bf16.msra.mxu0 %v183
  %376 = vmatprep.subr.bf16.mxu0 %v180
  %377 = vmatpush1.bf16.msra.mxu0 %v179
  %378 = vmatprep.subr.bf16.mxu0 %v176
  %379 = vmatpush1.bf16.msra.mxu0 %v175
  %380 = vmatprep.subr.bf16.mxu0 %v172
  %381 = vmatpush1.bf16.msra.mxu0 %v171
  %382 = vmatprep.subr.bf16.mxu0 %v168
  %383 = vmatpush1.bf16.msra.mxu0 %v167
  %384 = vmatprep.subr.bf16.mxu0 %v164
  %385 = vmatpush1.bf16.msra.mxu0 %v163
  %386 = vmatprep.subr.bf16.mxu0 %v160
  %387 = vmatpush1.bf16.msra.mxu0 %v159
  %388 = vmatprep.subr.bf16.mxu0 %v156
  %389 = vmatpush1.bf16.msra.mxu0 %v155
  %390 = vmatprep.subr.bf16.mxu0 0
  %391 = vmatpush2.bf16.msra.mxu0 0
  %392 = vmatprep.subr.bf16.mxu0 0
  %393 = vmatpush2.bf16.msra.mxu0 0
  %394 = vmatprep.subr.bf16.mxu0 0
  %395 = vmatpush2.bf16.msra.mxu0 0
  %396 = vmatprep.subr.bf16.mxu0 0
  %397 = vmatpush2.bf16.msra.mxu0 0
  %398 = vmatprep.subr.bf16.mxu0 0
  %399 = vmatpush2.bf16.msra.mxu0 0
  %400 = vmatprep.subr.bf16.mxu0 0
  %401 = vmatpush2.bf16.msra.mxu0 0
  %402 = vmatprep.subr.bf16.mxu0 0
  %403 = vmatpush2.bf16.msra.mxu0 0
  %404 = vmatprep.subr.bf16.mxu0 0
  %405 = vmatpush2.bf16.msra.mxu0 0
  %406 = vmatprep.mubr.bf16.mxu0 0
  %407 = vmatmul.mubr.bf16.gmra.mxu0 %v332
  %v408 = vpop.f32.mrf.mxu0
  %v409 = vadd.f32 0.0, %v408
  %v410 = vpop.f32.mrf.mxu0
  %v411 = vadd.f32 0.0, %v410
  %v412 = vpop.f32.mrf.mxu0
  %v413 = vpop.f32.mrf.mxu0
  %414 = vdwg.mxu0
  %v415 = vadd.f32 %v328, %v368
  %v416 = vadd.f32 %v329, %v370
  %v417 = vadd.f32 %v330, %v409
  %v418 = vadd.f32 %v331, %v411
  %v419 = vxor.u32 %v415, 2147483648
  %v420 = vmul.f32 %v419, 1.442695
  %v421 = vpow.pop %v420
  %v422 = vadd.f32 %v421, 1.0
  %v423 = vrcp.pop %v422
  %v424 = vmul.f32 1.0, %v423
  %v425 = vxor.u32 %v416, 2147483648
  %v426 = vmul.f32 %v425, 1.442695
  %v427 = vpow.pop %v426
  %v428 = vadd.f32 %v427, 1.0
  %v429 = vrcp.pop %v428
  %v430 = vmul.f32 1.0, %v429
  %v431 = vtanh.pop %v417
  %v432 = vxor.u32 %v418, 2147483648
  %v433 = vmul.f32 %v432, 1.442695
  %v434 = vpow.pop %v433
  %v435 = vadd.f32 %v434, 1.0
  %v436 = vrcp.pop %v435
  %v437 = vmul.f32 1.0, %v436
  %v438 = vmul.f32 %v430, %v324
  %v439 = vmul.f32 %v424, %v431
  %v440 = vadd.f32 %v438, %v439
  %v441 = vtanh.pop %v440
  %v442 = vmul.f32 %v437, %v441
  %s443 = scalar_lea.vmem %s0, 64
  %v444 = vld [vmem:[%s443] sm:$0xff]
  %v445 = vld [vmem:[%s443 + $0x8] sm:$0xff]
  %v446 = vld [vmem:[%s443 + $0x10] sm:$0xff]
  %v447 = vld [vmem:[%s443 + $0x18] sm:$0xff]
  %v448 = vpack.c.bf16 %v442, %v442
  %449 = vmatprep.subr.bf16.mxu0 %v182
  %450 = vmatpush1.bf16.msra.mxu0 %v181
  %451 = vmatprep.subr.bf16.mxu0 %v178
  %452 = vmatpush1.bf16.msra.mxu0 %v177
  %453 = vmatprep.subr.bf16.mxu0 %v174
  %454 = vmatpush1.bf16.msra.mxu0 %v173
  %455 = vmatprep.subr.bf16.mxu0 %v170
  %456 = vmatpush1.bf16.msra.mxu0 %v169
  %457 = vmatprep.subr.bf16.mxu0 %v166
  %458 = vmatpush1.bf16.msra.mxu0 %v165
  %459 = vmatprep.subr.bf16.mxu0 %v162
  %460 = vmatpush1.bf16.msra.mxu0 %v161
  %461 = vmatprep.subr.bf16.mxu0 %v158
  %462 = vmatpush1.bf16.msra.mxu0 %v157
  %463 = vmatprep.subr.bf16.mxu0 %v154
  %464 = vmatpush1.bf16.msra.mxu0 %v153
  %465 = vmatprep.subr.bf16.mxu0 0
  %466 = vmatpush2.bf16.msra.mxu0 0
  %467 = vmatprep.subr.bf16.mxu0 0
  %468 = vmatpush2.bf16.msra.mxu0 0
  %469 = vmatprep.subr.bf16.mxu0 0
  %470 = vmatpush2.bf16.msra.mxu0 0
  %471 = vmatprep.subr.bf16.mxu0 0
  %472 = vmatpush2.bf16.msra.mxu0 0
  %473 = vmatprep.subr.bf16.mxu0 0
  %474 = vmatpush2.bf16.msra.mxu0 0
  %475 = vmatprep.subr.bf16.mxu0 0
  %476 = vmatpush2.bf16.msra.mxu0 0
  %477 = vmatprep.subr.bf16.mxu0 0
  %478 = vmatpush2.bf16.msra.mxu0 0
  %479 = vmatprep.subr.bf16.mxu0 0
  %480 = vmatpush2.bf16.msra.mxu0 0
  %481 = vmatprep.mubr.bf16.mxu0 0
  %482 = vmatmul.mubr.bf16.gmra.mxu0 %v448
  %v483 = vpop.f32.mrf.mxu0
  %v484 = vadd.f32 0.0, %v483
  %v485 = vpop.f32.mrf.mxu0
  %v486 = vadd.f32 0.0, %v485
  %v487 = vpop.f32.mrf.mxu0
  %v488 = vpop.f32.mrf.mxu0
  %489 = vdwg.mxu0
  %490 = vmatprep.subr.bf16.mxu0 %v184
  %491 = vmatpush1.bf16.msra.mxu0 %v183
  %492 = vmatprep.subr.bf16.mxu0 %v180
  %493 = vmatpush1.bf16.msra.mxu0 %v179
  %494 = vmatprep.subr.bf16.mxu0 %v176
  %495 = vmatpush1.bf16.msra.mxu0 %v175
  %496 = vmatprep.subr.bf16.mxu0 %v172
  %497 = vmatpush1.bf16.msra.mxu0 %v171
  %498 = vmatprep.subr.bf16.mxu0 %v168
  %499 = vmatpush1.bf16.msra.mxu0 %v167
  %500 = vmatprep.subr.bf16.mxu0 %v164
  %501 = vmatpush1.bf16.msra.mxu0 %v163
  %502 = vmatprep.subr.bf16.mxu0 %v160
  %503 = vmatpush1.bf16.msra.mxu0 %v159
  %504 = vmatprep.subr.bf16.mxu0 %v156
  %505 = vmatpush1.bf16.msra.mxu0 %v155
  %506 = vmatprep.subr.bf16.mxu0 0
  %507 = vmatpush2.bf16.msra.mxu0 0
  %508 = vmatprep.subr.bf16.mxu0 0
  %509 = vmatpush2.bf16.msra.mxu0 0
  %510 = vmatprep.subr.bf16.mxu0 0
  %511 = vmatpush2.bf16.msra.mxu0 0
  %512 = vmatprep.subr.bf16.mxu0 0
  %513 = vmatpush2.bf16.msra.mxu0 0
  %514 = vmatprep.subr.bf16.mxu0 0
  %515 = vmatpush2.bf16.msra.mxu0 0
  %516 = vmatprep.subr.bf16.mxu0 0
  %517 = vmatpush2.bf16.msra.mxu0 0
  %518 = vmatprep.subr.bf16.mxu0 0
  %519 = vmatpush2.bf16.msra.mxu0 0
  %520 = vmatprep.subr.bf16.mxu0 0
  %521 = vmatpush2.bf16.msra.mxu0 0
  %522 = vmatprep.mubr.bf16.mxu0 0
  %523 = vmatmul.mubr.bf16.gmra.mxu0 %v448
  %v524 = vpop.f32.mrf.mxu0
  %v525 = vadd.f32 0.0, %v524
  %v526 = vpop.f32.mrf.mxu0
  %v527 = vadd.f32 0.0, %v526
  %v528 = vpop.f32.mrf.mxu0
  %v529 = vpop.f32.mrf.mxu0
  %530 = vdwg.mxu0
  %v531 = vadd.f32 %v444, %v484
  %v532 = vadd.f32 %v445, %v486
  %v533 = vadd.f32 %v446, %v525
  %v534 = vadd.f32 %v447, %v527
  %v535 = vxor.u32 %v531, 2147483648
  %v536 = vmul.f32 %v535, 1.442695
  %v537 = vpow.pop %v536
  %v538 = vadd.f32 %v537, 1.0
  %v539 = vrcp.pop %v538
  %v540 = vmul.f32 1.0, %v539
  %v541 = vxor.u32 %v532, 2147483648
  %v542 = vmul.f32 %v541, 1.442695
  %v543 = vpow.pop %v542
  %v544 = vadd.f32 %v543, 1.0
  %v545 = vrcp.pop %v544
  %v546 = vmul.f32 1.0, %v545
  %v547 = vtanh.pop %v533
  %v548 = vxor.u32 %v534, 2147483648
  %v549 = vmul.f32 %v548, 1.442695
  %v550 = vpow.pop %v549
  %v551 = vadd.f32 %v550, 1.0
  %v552 = vrcp.pop %v551
  %v553 = vmul.f32 1.0, %v552
  %v554 = vmul.f32 %v546, %v440
  %v555 = vmul.f32 %v540, %v547
  %v556 = vadd.f32 %v554, %v555
  %v557 = vtanh.pop %v556
  %v558 = vmul.f32 %v553, %v557
  %s559 = scalar_lea.vmem %s0, 96
  %v560 = vld [vmem:[%s559] sm:$0xff]
  %v561 = vld [vmem:[%s559 + $0x8] sm:$0xff]
  %v562 = vld [vmem:[%s559 + $0x10] sm:$0xff]
  %v563 = vld [vmem:[%s559 + $0x18] sm:$0xff]
  %v564 = vpack.c.bf16 %v558, %v558
  %565 = vmatprep.subr.bf16.mxu0 %v182
  %566 = vmatpush1.bf16.msra.mxu0 %v181
  %567 = vmatprep.subr.bf16.mxu0 %v178
  %568 = vmatpush1.bf16.msra.mxu0 %v177
  %569 = vmatprep.subr.bf16.mxu0 %v174
  %570 = vmatpush1.bf16.msra.mxu0 %v173
  %571 = vmatprep.subr.bf16.mxu0 %v170
  %572 = vmatpush1.bf16.msra.mxu0 %v169
  %573 = vmatprep.subr.bf16.mxu0 %v166
  %574 = vmatpush1.bf16.msra.mxu0 %v165
  %575 = vmatprep.subr.bf16.mxu0 %v162
  %576 = vmatpush1.bf16.msra.mxu0 %v161
  %577 = vmatprep.subr.bf16.mxu0 %v158
  %578 = vmatpush1.bf16.msra.mxu0 %v157
  %579 = vmatprep.subr.bf16.mxu0 %v154
  %580 = vmatpush1.bf16.msra.mxu0 %v153
  %581 = vmatprep.subr.bf16.mxu0 0
  %582 = vmatpush2.bf16.msra.mxu0 0
  %583 = vmatprep.subr.bf16.mxu0 0
  %584 = vmatpush2.bf16.msra.mxu0 0
  %585 = vmatprep.subr.bf16.mxu0 0
  %586 = vmatpush2.bf16.msra.mxu0 0
  %587 = vmatprep.subr.bf16.mxu0 0
  %588 = vmatpush2.bf16.msra.mxu0 0
  %589 = vmatprep.subr.bf16.mxu0 0
  %590 = vmatpush2.bf16.msra.mxu0 0
  %591 = vmatprep.subr.bf16.mxu0 0
  %592 = vmatpush2.bf16.msra.mxu0 0
  %593 = vmatprep.subr.bf16.mxu0 0
  %594 = vmatpush2.bf16.msra.mxu0 0
  %595 = vmatprep.subr.bf16.mxu0 0
  %596 = vmatpush2.bf16.msra.mxu0 0
  %597 = vmatprep.mubr.bf16.mxu0 0
  %598 = vmatmul.mubr.bf16.gmra.mxu0 %v564
  %v599 = vpop.f32.mrf.mxu0
  %v600 = vadd.f32 0.0, %v599
  %v601 = vpop.f32.mrf.mxu0
  %v602 = vadd.f32 0.0, %v601
  %v603 = vpop.f32.mrf.mxu0
  %v604 = vpop.f32.mrf.mxu0
  %605 = vdwg.mxu0
  %606 = vmatprep.subr.bf16.mxu0 %v184
  %607 = vmatpush1.bf16.msra.mxu0 %v183
  %608 = vmatprep.subr.bf16.mxu0 %v180
  %609 = vmatpush1.bf16.msra.mxu0 %v179
  %610 = vmatprep.subr.bf16.mxu0 %v176
  %611 = vmatpush1.bf16.msra.mxu0 %v175
  %612 = vmatprep.subr.bf16.mxu0 %v172
  %613 = vmatpush1.bf16.msra.mxu0 %v171
  %614 = vmatprep.subr.bf16.mxu0 %v168
  %615 = vmatpush1.bf16.msra.mxu0 %v167
  %616 = vmatprep.subr.bf16.mxu0 %v164
  %617 = vmatpush1.bf16.msra.mxu0 %v163
  %618 = vmatprep.subr.bf16.mxu0 %v160
  %619 = vmatpush1.bf16.msra.mxu0 %v159
  %620 = vmatprep.subr.bf16.mxu0 %v156
  %621 = vmatpush1.bf16.msra.mxu0 %v155
  %622 = vmatprep.subr.bf16.mxu0 0
  %623 = vmatpush2.bf16.msra.mxu0 0
  %624 = vmatprep.subr.bf16.mxu0 0
  %625 = vmatpush2.bf16.msra.mxu0 0
  %626 = vmatprep.subr.bf16.mxu0 0
  %627 = vmatpush2.bf16.msra.mxu0 0
  %628 = vmatprep.subr.bf16.mxu0 0
  %629 = vmatpush2.bf16.msra.mxu0 0
  %630 = vmatprep.subr.bf16.mxu0 0
  %631 = vmatpush2.bf16.msra.mxu0 0
  %632 = vmatprep.subr.bf16.mxu0 0
  %633 = vmatpush2.bf16.msra.mxu0 0
  %634 = vmatprep.subr.bf16.mxu0 0
  %635 = vmatpush2.bf16.msra.mxu0 0
  %636 = vmatprep.subr.bf16.mxu0 0
  %637 = vmatpush2.bf16.msra.mxu0 0
  %638 = vmatprep.mubr.bf16.mxu0 0
  %639 = vmatmul.mubr.bf16.gmra.mxu0 %v564
  %v640 = vpop.f32.mrf.mxu0
  %v641 = vadd.f32 0.0, %v640
  %v642 = vpop.f32.mrf.mxu0
  %v643 = vadd.f32 0.0, %v642
  %v644 = vpop.f32.mrf.mxu0
  %v645 = vpop.f32.mrf.mxu0
  %646 = vdwg.mxu0
  %v647 = vadd.f32 %v560, %v600
  %v648 = vadd.f32 %v561, %v602
  %v649 = vadd.f32 %v562, %v641
  %v650 = vadd.f32 %v563, %v643
  %v651 = vxor.u32 %v647, 2147483648
  %v652 = vmul.f32 %v651, 1.442695
  %v653 = vpow.pop %v652
  %v654 = vadd.f32 %v653, 1.0
  %v655 = vrcp.pop %v654
  %v656 = vmul.f32 1.0, %v655
  %v657 = vxor.u32 %v648, 2147483648
  %v658 = vmul.f32 %v657, 1.442695
  %v659 = vpow.pop %v658
  %v660 = vadd.f32 %v659, 1.0
  %v661 = vrcp.pop %v660
  %v662 = vmul.f32 1.0, %v661
  %v663 = vtanh.pop %v649
  %v664 = vxor.u32 %v650, 2147483648
  %v665 = vmul.f32 %v664, 1.442695
  %v666 = vpow.pop %v665
  %v667 = vadd.f32 %v666, 1.0
  %v668 = vrcp.pop %v667
  %v669 = vmul.f32 1.0, %v668
  %v670 = vmul.f32 %v662, %v556
  %v671 = vmul.f32 %v656, %v663
  %v672 = vadd.f32 %v670, %v671
  %v673 = vtanh.pop %v672
  %v674 = vmul.f32 %v669, %v673
  %s675 = scalar_lea.vmem %s0, 128
  %v676 = vld [vmem:[%s675] sm:$0xff]
  %v677 = vld [vmem:[%s675 + $0x8] sm:$0xff]
  %v678 = vld [vmem:[%s675 + $0x10] sm:$0xff]
  %v679 = vld [vmem:[%s675 + $0x18] sm:$0xff]
  %v680 = vpack.c.bf16 %v674, %v674
  %681 = vmatprep.subr.bf16.mxu0 %v182
  %682 = vmatpush1.bf16.msra.mxu0 %v181
  %683 = vmatprep.subr.bf16.mxu0 %v178
  %684 = vmatpush1.bf16.msra.mxu0 %v177
  %685 = vmatprep.subr.bf16.mxu0 %v174
  %686 = vmatpush1.bf16.msra.mxu0 %v173
  %687 = vmatprep.subr.bf16.mxu0 %v170
  %688 = vmatpush1.bf16.msra.mxu0 %v169
  %689 = vmatprep.subr.bf16.mxu0 %v166
  %690 = vmatpush1.bf16.msra.mxu0 %v165
  %691 = vmatprep.subr.bf16.mxu0 %v162
  %692 = vmatpush1.bf16.msra.mxu0 %v161
  %693 = vmatprep.subr.bf16.mxu0 %v158
  %694 = vmatpush1.bf16.msra.mxu0 %v157
  %695 = vmatprep.subr.bf16.mxu0 %v154
  %696 = vmatpush1.bf16.msra.mxu0 %v153
  %697 = vmatprep.subr.bf16.mxu0 0
  %698 = vmatpush2.bf16.msra.mxu0 0
  %699 = vmatprep.subr.bf16.mxu0 0
  %700 = vmatpush2.bf16.msra.mxu0 0
  %701 = vmatprep.subr.bf16.mxu0 0
  %702 = vmatpush2.bf16.msra.mxu0 0
  %703 = vmatprep.subr.bf16.mxu0 0
  %704 = vmatpush2.bf16.msra.mxu0 0
  %705 = vmatprep.subr.bf16.mxu0 0
  %706 = vmatpush2.bf16.msra.mxu0 0
  %707 = vmatprep.subr.bf16.mxu0 0
  %708 = vmatpush2.bf16.msra.mxu0 0
  %709 = vmatprep.subr.bf16.mxu0 0
  %710 = vmatpush2.bf16.msra.mxu0 0
  %711 = vmatprep.subr.bf16.mxu0 0
  %712 = vmatpush2.bf16.msra.mxu0 0
  %713 = vmatprep.mubr.bf16.mxu0 0
  %714 = vmatmul.mubr.bf16.gmra.mxu0 %v680
  %v715 = vpop.f32.mrf.mxu0
  %v716 = vadd.f32 0.0, %v715
  %v717 = vpop.f32.mrf.mxu0
  %v718 = vadd.f32 0.0, %v717
  %v719 = vpop.f32.mrf.mxu0
  %v720 = vpop.f32.mrf.mxu0
  %721 = vdwg.mxu0
  %722 = vmatprep.subr.bf16.mxu0 %v184
  %723 = vmatpush1.bf16.msra.mxu0 %v183
  %724 = vmatprep.subr.bf16.mxu0 %v180
  %725 = vmatpush1.bf16.msra.mxu0 %v179
  %726 = vmatprep.subr.bf16.mxu0 %v176
  %727 = vmatpush1.bf16.msra.mxu0 %v175
  %728 = vmatprep.subr.bf16.mxu0 %v172
  %729 = vmatpush1.bf16.msra.mxu0 %v171
  %730 = vmatprep.subr.bf16.mxu0 %v168
  %731 = vmatpush1.bf16.msra.mxu0 %v167
  %732 = vmatprep.subr.bf16.mxu0 %v164
  %733 = vmatpush1.bf16.msra.mxu0 %v163
  %734 = vmatprep.subr.bf16.mxu0 %v160
  %735 = vmatpush1.bf16.msra.mxu0 %v159
  %736 = vmatprep.subr.bf16.mxu0 %v156
  %737 = vmatpush1.bf16.msra.mxu0 %v155
  %738 = vmatprep.subr.bf16.mxu0 0
  %739 = vmatpush2.bf16.msra.mxu0 0
  %740 = vmatprep.subr.bf16.mxu0 0
  %741 = vmatpush2.bf16.msra.mxu0 0
  %742 = vmatprep.subr.bf16.mxu0 0
  %743 = vmatpush2.bf16.msra.mxu0 0
  %744 = vmatprep.subr.bf16.mxu0 0
  %745 = vmatpush2.bf16.msra.mxu0 0
  %746 = vmatprep.subr.bf16.mxu0 0
  %747 = vmatpush2.bf16.msra.mxu0 0
  %748 = vmatprep.subr.bf16.mxu0 0
  %749 = vmatpush2.bf16.msra.mxu0 0
  %750 = vmatprep.subr.bf16.mxu0 0
  %751 = vmatpush2.bf16.msra.mxu0 0
  %752 = vmatprep.subr.bf16.mxu0 0
  %753 = vmatpush2.bf16.msra.mxu0 0
  %754 = vmatprep.mubr.bf16.mxu0 0
  %755 = vmatmul.mubr.bf16.gmra.mxu0 %v680
  %v756 = vpop.f32.mrf.mxu0
  %v757 = vadd.f32 0.0, %v756
  %v758 = vpop.f32.mrf.mxu0
  %v759 = vadd.f32 0.0, %v758
  %v760 = vpop.f32.mrf.mxu0
  %v761 = vpop.f32.mrf.mxu0
  %762 = vdwg.mxu0
  %v763 = vadd.f32 %v676, %v716
  %v764 = vadd.f32 %v677, %v718
  %v765 = vadd.f32 %v678, %v757
  %v766 = vadd.f32 %v679, %v759
  %v767 = vxor.u32 %v763, 2147483648
  %v768 = vmul.f32 %v767, 1.442695
  %v769 = vpow.pop %v768
  %v770 = vadd.f32 %v769, 1.0
  %v771 = vrcp.pop %v770
  %v772 = vmul.f32 1.0, %v771
  %v773 = vxor.u32 %v764, 2147483648
  %v774 = vmul.f32 %v773, 1.442695
  %v775 = vpow.pop %v774
  %v776 = vadd.f32 %v775, 1.0
  %v777 = vrcp.pop %v776
  %v778 = vmul.f32 1.0, %v777
  %v779 = vtanh.pop %v765
  %v780 = vxor.u32 %v766, 2147483648
  %v781 = vmul.f32 %v780, 1.442695
  %v782 = vpow.pop %v781
  %v783 = vadd.f32 %v782, 1.0
  %v784 = vrcp.pop %v783
  %v785 = vmul.f32 1.0, %v784
  %v786 = vmul.f32 %v778, %v672
  %v787 = vmul.f32 %v772, %v779
  %v788 = vadd.f32 %v786, %v787
  %v789 = vtanh.pop %v788
  %v790 = vmul.f32 %v785, %v789
  %s791 = scalar_lea.vmem %s0, 160
  %v792 = vld [vmem:[%s791] sm:$0xff]
  %v793 = vld [vmem:[%s791 + $0x8] sm:$0xff]
  %v794 = vld [vmem:[%s791 + $0x10] sm:$0xff]
  %v795 = vld [vmem:[%s791 + $0x18] sm:$0xff]
  %v796 = vpack.c.bf16 %v790, %v790
  %797 = vmatprep.subr.bf16.mxu0 %v182
  %798 = vmatpush1.bf16.msra.mxu0 %v181
  %799 = vmatprep.subr.bf16.mxu0 %v178
  %800 = vmatpush1.bf16.msra.mxu0 %v177
  %801 = vmatprep.subr.bf16.mxu0 %v174
  %802 = vmatpush1.bf16.msra.mxu0 %v173
  %803 = vmatprep.subr.bf16.mxu0 %v170
  %804 = vmatpush1.bf16.msra.mxu0 %v169
  %805 = vmatprep.subr.bf16.mxu0 %v166
  %806 = vmatpush1.bf16.msra.mxu0 %v165
  %807 = vmatprep.subr.bf16.mxu0 %v162
  %808 = vmatpush1.bf16.msra.mxu0 %v161
  %809 = vmatprep.subr.bf16.mxu0 %v158
  %810 = vmatpush1.bf16.msra.mxu0 %v157
  %811 = vmatprep.subr.bf16.mxu0 %v154
  %812 = vmatpush1.bf16.msra.mxu0 %v153
  %813 = vmatprep.subr.bf16.mxu0 0
  %814 = vmatpush2.bf16.msra.mxu0 0
  %815 = vmatprep.subr.bf16.mxu0 0
  %816 = vmatpush2.bf16.msra.mxu0 0
  %817 = vmatprep.subr.bf16.mxu0 0
  %818 = vmatpush2.bf16.msra.mxu0 0
  %819 = vmatprep.subr.bf16.mxu0 0
  %820 = vmatpush2.bf16.msra.mxu0 0
  %821 = vmatprep.subr.bf16.mxu0 0
  %822 = vmatpush2.bf16.msra.mxu0 0
  %823 = vmatprep.subr.bf16.mxu0 0
  %824 = vmatpush2.bf16.msra.mxu0 0
  %825 = vmatprep.subr.bf16.mxu0 0
  %826 = vmatpush2.bf16.msra.mxu0 0
  %827 = vmatprep.subr.bf16.mxu0 0
  %828 = vmatpush2.bf16.msra.mxu0 0
  %829 = vmatprep.mubr.bf16.mxu0 0
  %830 = vmatmul.mubr.bf16.gmra.mxu0 %v796
  %v831 = vpop.f32.mrf.mxu0
  %v832 = vadd.f32 0.0, %v831
  %v833 = vpop.f32.mrf.mxu0
  %v834 = vadd.f32 0.0, %v833
  %v835 = vpop.f32.mrf.mxu0
  %v836 = vpop.f32.mrf.mxu0
  %837 = vdwg.mxu0
  %838 = vmatprep.subr.bf16.mxu0 %v184
  %839 = vmatpush1.bf16.msra.mxu0 %v183
  %840 = vmatprep.subr.bf16.mxu0 %v180
  %841 = vmatpush1.bf16.msra.mxu0 %v179
  %842 = vmatprep.subr.bf16.mxu0 %v176
  %843 = vmatpush1.bf16.msra.mxu0 %v175
  %844 = vmatprep.subr.bf16.mxu0 %v172
  %845 = vmatpush1.bf16.msra.mxu0 %v171
  %846 = vmatprep.subr.bf16.mxu0 %v168
  %847 = vmatpush1.bf16.msra.mxu0 %v167
  %848 = vmatprep.subr.bf16.mxu0 %v164
  %849 = vmatpush1.bf16.msra.mxu0 %v163
  %850 = vmatprep.subr.bf16.mxu0 %v160
  %851 = vmatpush1.bf16.msra.mxu0 %v159
  %852 = vmatprep.subr.bf16.mxu0 %v156
  %853 = vmatpush1.bf16.msra.mxu0 %v155
  %854 = vmatprep.subr.bf16.mxu0 0
  %855 = vmatpush2.bf16.msra.mxu0 0
  %856 = vmatprep.subr.bf16.mxu0 0
  %857 = vmatpush2.bf16.msra.mxu0 0
  %858 = vmatprep.subr.bf16.mxu0 0
  %859 = vmatpush2.bf16.msra.mxu0 0
  %860 = vmatprep.subr.bf16.mxu0 0
  %861 = vmatpush2.bf16.msra.mxu0 0
  %862 = vmatprep.subr.bf16.mxu0 0
  %863 = vmatpush2.bf16.msra.mxu0 0
  %864 = vmatprep.subr.bf16.mxu0 0
  %865 = vmatpush2.bf16.msra.mxu0 0
  %866 = vmatprep.subr.bf16.mxu0 0
  %867 = vmatpush2.bf16.msra.mxu0 0
  %868 = vmatprep.subr.bf16.mxu0 0
  %869 = vmatpush2.bf16.msra.mxu0 0
  %870 = vmatprep.mubr.bf16.mxu0 0
  %871 = vmatmul.mubr.bf16.gmra.mxu0 %v796
  %v872 = vpop.f32.mrf.mxu0
  %v873 = vadd.f32 0.0, %v872
  %v874 = vpop.f32.mrf.mxu0
  %v875 = vadd.f32 0.0, %v874
  %v876 = vpop.f32.mrf.mxu0
  %v877 = vpop.f32.mrf.mxu0
  %878 = vdwg.mxu0
  %v879 = vadd.f32 %v792, %v832
  %v880 = vadd.f32 %v793, %v834
  %v881 = vadd.f32 %v794, %v873
  %v882 = vadd.f32 %v795, %v875
  %v883 = vxor.u32 %v879, 2147483648
  %v884 = vmul.f32 %v883, 1.442695
  %v885 = vpow.pop %v884
  %v886 = vadd.f32 %v885, 1.0
  %v887 = vrcp.pop %v886
  %v888 = vmul.f32 1.0, %v887
  %v889 = vxor.u32 %v880, 2147483648
  %v890 = vmul.f32 %v889, 1.442695
  %v891 = vpow.pop %v890
  %v892 = vadd.f32 %v891, 1.0
  %v893 = vrcp.pop %v892
  %v894 = vmul.f32 1.0, %v893
  %v895 = vtanh.pop %v881
  %v896 = vxor.u32 %v882, 2147483648
  %v897 = vmul.f32 %v896, 1.442695
  %v898 = vpow.pop %v897
  %v899 = vadd.f32 %v898, 1.0
  %v900 = vrcp.pop %v899
  %v901 = vmul.f32 1.0, %v900
  %v902 = vmul.f32 %v894, %v788
  %v903 = vmul.f32 %v888, %v895
  %v904 = vadd.f32 %v902, %v903
  %v905 = vtanh.pop %v904
  %v906 = vmul.f32 %v901, %v905
  %s907 = scalar_lea.vmem %s0, 192
  %v908 = vld [vmem:[%s907] sm:$0xff]
  %v909 = vld [vmem:[%s907 + $0x8] sm:$0xff]
  %v910 = vld [vmem:[%s907 + $0x10] sm:$0xff]
  %v911 = vld [vmem:[%s907 + $0x18] sm:$0xff]
  %v912 = vpack.c.bf16 %v906, %v906
  %913 = vmatprep.subr.bf16.mxu0 %v182
  %914 = vmatpush1.bf16.msra.mxu0 %v181
  %915 = vmatprep.subr.bf16.mxu0 %v178
  %916 = vmatpush1.bf16.msra.mxu0 %v177
  %917 = vmatprep.subr.bf16.mxu0 %v174
  %918 = vmatpush1.bf16.msra.mxu0 %v173
  %919 = vmatprep.subr.bf16.mxu0 %v170
  %920 = vmatpush1.bf16.msra.mxu0 %v169
  %921 = vmatprep.subr.bf16.mxu0 %v166
  %922 = vmatpush1.bf16.msra.mxu0 %v165
  %923 = vmatprep.subr.bf16.mxu0 %v162
  %924 = vmatpush1.bf16.msra.mxu0 %v161
  %925 = vmatprep.subr.bf16.mxu0 %v158
  %926 = vmatpush1.bf16.msra.mxu0 %v157
  %927 = vmatprep.subr.bf16.mxu0 %v154
  %928 = vmatpush1.bf16.msra.mxu0 %v153
  %929 = vmatprep.subr.bf16.mxu0 0
  %930 = vmatpush2.bf16.msra.mxu0 0
  %931 = vmatprep.subr.bf16.mxu0 0
  %932 = vmatpush2.bf16.msra.mxu0 0
  %933 = vmatprep.subr.bf16.mxu0 0
  %934 = vmatpush2.bf16.msra.mxu0 0
  %935 = vmatprep.subr.bf16.mxu0 0
  %936 = vmatpush2.bf16.msra.mxu0 0
  %937 = vmatprep.subr.bf16.mxu0 0
  %938 = vmatpush2.bf16.msra.mxu0 0
  %939 = vmatprep.subr.bf16.mxu0 0
  %940 = vmatpush2.bf16.msra.mxu0 0
  %941 = vmatprep.subr.bf16.mxu0 0
  %942 = vmatpush2.bf16.msra.mxu0 0
  %943 = vmatprep.subr.bf16.mxu0 0
  %944 = vmatpush2.bf16.msra.mxu0 0
  %945 = vmatprep.mubr.bf16.mxu0 0
  %946 = vmatmul.mubr.bf16.gmra.mxu0 %v912
  %v947 = vpop.f32.mrf.mxu0
  %v948 = vadd.f32 0.0, %v947
  %v949 = vpop.f32.mrf.mxu0
  %v950 = vadd.f32 0.0, %v949
  %v951 = vpop.f32.mrf.mxu0
  %v952 = vpop.f32.mrf.mxu0
  %953 = vdwg.mxu0
  %954 = vmatprep.subr.bf16.mxu0 %v184
  %955 = vmatpush1.bf16.msra.mxu0 %v183
  %956 = vmatprep.subr.bf16.mxu0 %v180
  %957 = vmatpush1.bf16.msra.mxu0 %v179
  %958 = vmatprep.subr.bf16.mxu0 %v176
  %959 = vmatpush1.bf16.msra.mxu0 %v175
  %960 = vmatprep.subr.bf16.mxu0 %v172
  %961 = vmatpush1.bf16.msra.mxu0 %v171
  %962 = vmatprep.subr.bf16.mxu0 %v168
  %963 = vmatpush1.bf16.msra.mxu0 %v167
  %964 = vmatprep.subr.bf16.mxu0 %v164
  %965 = vmatpush1.bf16.msra.mxu0 %v163
  %966 = vmatprep.subr.bf16.mxu0 %v160
  %967 = vmatpush1.bf16.msra.mxu0 %v159
  %968 = vmatprep.subr.bf16.mxu0 %v156
  %969 = vmatpush1.bf16.msra.mxu0 %v155
  %970 = vmatprep.subr.bf16.mxu0 0
  %971 = vmatpush2.bf16.msra.mxu0 0
  %972 = vmatprep.subr.bf16.mxu0 0
  %973 = vmatpush2.bf16.msra.mxu0 0
  %974 = vmatprep.subr.bf16.mxu0 0
  %975 = vmatpush2.bf16.msra.mxu0 0
  %976 = vmatprep.subr.bf16.mxu0 0
  %977 = vmatpush2.bf16.msra.mxu0 0
  %978 = vmatprep.subr.bf16.mxu0 0
  %979 = vmatpush2.bf16.msra.mxu0 0
  %980 = vmatprep.subr.bf16.mxu0 0
  %981 = vmatpush2.bf16.msra.mxu0 0
  %982 = vmatprep.subr.bf16.mxu0 0
  %983 = vmatpush2.bf16.msra.mxu0 0
  %984 = vmatprep.subr.bf16.mxu0 0
  %985 = vmatpush2.bf16.msra.mxu0 0
  %986 = vmatprep.mubr.bf16.mxu0 0
  %987 = vmatmul.mubr.bf16.gmra.mxu0 %v912
  %v988 = vpop.f32.mrf.mxu0
  %v989 = vadd.f32 0.0, %v988
  %v990 = vpop.f32.mrf.mxu0
  %v991 = vadd.f32 0.0, %v990
  %v992 = vpop.f32.mrf.mxu0
  %v993 = vpop.f32.mrf.mxu0
  %994 = vdwg.mxu0
  %v995 = vadd.f32 %v908, %v948
  %v996 = vadd.f32 %v909, %v950
  %v997 = vadd.f32 %v910, %v989
  %v998 = vadd.f32 %v911, %v991
  %v999 = vxor.u32 %v995, 2147483648
  %v1000 = vmul.f32 %v999, 1.442695
  %v1001 = vpow.pop %v1000
  %v1002 = vadd.f32 %v1001, 1.0
  %v1003 = vrcp.pop %v1002
  %v1004 = vmul.f32 1.0, %v1003
  %v1005 = vxor.u32 %v996, 2147483648
  %v1006 = vmul.f32 %v1005, 1.442695
  %v1007 = vpow.pop %v1006
  %v1008 = vadd.f32 %v1007, 1.0
  %v1009 = vrcp.pop %v1008
  %v1010 = vmul.f32 1.0, %v1009
  %v1011 = vtanh.pop %v997
  %v1012 = vxor.u32 %v998, 2147483648
  %v1013 = vmul.f32 %v1012, 1.442695
  %v1014 = vpow.pop %v1013
  %v1015 = vadd.f32 %v1014, 1.0
  %v1016 = vrcp.pop %v1015
  %v1017 = vmul.f32 1.0, %v1016
  %v1018 = vmul.f32 %v1010, %v904
  %v1019 = vmul.f32 %v1004, %v1011
  %v1020 = vadd.f32 %v1018, %v1019
  %v1021 = vtanh.pop %v1020
  %v1022 = vmul.f32 %v1017, %v1021
  %s1023 = scalar_lea.vmem %s0, 224
  %v1024 = vld [vmem:[%s1023] sm:$0xff]
  %v1025 = vld [vmem:[%s1023 + $0x8] sm:$0xff]
  %v1026 = vld [vmem:[%s1023 + $0x10] sm:$0xff]
  %v1027 = vld [vmem:[%s1023 + $0x18] sm:$0xff]
  %v1028 = vpack.c.bf16 %v1022, %v1022
  %1029 = vmatprep.subr.bf16.mxu0 %v182
  %1030 = vmatpush1.bf16.msra.mxu0 %v181
  %1031 = vmatprep.subr.bf16.mxu0 %v178
  %1032 = vmatpush1.bf16.msra.mxu0 %v177
  %1033 = vmatprep.subr.bf16.mxu0 %v174
  %1034 = vmatpush1.bf16.msra.mxu0 %v173
  %1035 = vmatprep.subr.bf16.mxu0 %v170
  %1036 = vmatpush1.bf16.msra.mxu0 %v169
  %1037 = vmatprep.subr.bf16.mxu0 %v166
  %1038 = vmatpush1.bf16.msra.mxu0 %v165
  %1039 = vmatprep.subr.bf16.mxu0 %v162
  %1040 = vmatpush1.bf16.msra.mxu0 %v161
  %1041 = vmatprep.subr.bf16.mxu0 %v158
  %1042 = vmatpush1.bf16.msra.mxu0 %v157
  %1043 = vmatprep.subr.bf16.mxu0 %v154
  %1044 = vmatpush1.bf16.msra.mxu0 %v153
  %1045 = vmatprep.subr.bf16.mxu0 0
  %1046 = vmatpush2.bf16.msra.mxu0 0
  %1047 = vmatprep.subr.bf16.mxu0 0
  %1048 = vmatpush2.bf16.msra.mxu0 0
  %1049 = vmatprep.subr.bf16.mxu0 0
  %1050 = vmatpush2.bf16.msra.mxu0 0
  %1051 = vmatprep.subr.bf16.mxu0 0
  %1052 = vmatpush2.bf16.msra.mxu0 0
  %1053 = vmatprep.subr.bf16.mxu0 0
  %1054 = vmatpush2.bf16.msra.mxu0 0
  %1055 = vmatprep.subr.bf16.mxu0 0
  %1056 = vmatpush2.bf16.msra.mxu0 0
  %1057 = vmatprep.subr.bf16.mxu0 0
  %1058 = vmatpush2.bf16.msra.mxu0 0
  %1059 = vmatprep.subr.bf16.mxu0 0
  %1060 = vmatpush2.bf16.msra.mxu0 0
  %1061 = vmatprep.mubr.bf16.mxu0 0
  %1062 = vmatmul.mubr.bf16.gmra.mxu0 %v1028
  %v1063 = vpop.f32.mrf.mxu0
  %v1064 = vadd.f32 0.0, %v1063
  %v1065 = vpop.f32.mrf.mxu0
  %v1066 = vadd.f32 0.0, %v1065
  %v1067 = vpop.f32.mrf.mxu0
  %v1068 = vpop.f32.mrf.mxu0
  %1069 = vdwg.mxu0
  %1070 = vmatprep.subr.bf16.mxu0 %v184
  %1071 = vmatpush1.bf16.msra.mxu0 %v183
  %1072 = vmatprep.subr.bf16.mxu0 %v180
  %1073 = vmatpush1.bf16.msra.mxu0 %v179
  %1074 = vmatprep.subr.bf16.mxu0 %v176
  %1075 = vmatpush1.bf16.msra.mxu0 %v175
  %1076 = vmatprep.subr.bf16.mxu0 %v172
  %1077 = vmatpush1.bf16.msra.mxu0 %v171
  %1078 = vmatprep.subr.bf16.mxu0 %v168
  %1079 = vmatpush1.bf16.msra.mxu0 %v167
  %1080 = vmatprep.subr.bf16.mxu0 %v164
  %1081 = vmatpush1.bf16.msra.mxu0 %v163
  %1082 = vmatprep.subr.bf16.mxu0 %v160
  %1083 = vmatpush1.bf16.msra.mxu0 %v159
  %1084 = vmatprep.subr.bf16.mxu0 %v156
  %1085 = vmatpush1.bf16.msra.mxu0 %v155
  %1086 = vmatprep.subr.bf16.mxu0 0
  %1087 = vmatpush2.bf16.msra.mxu0 0
  %1088 = vmatprep.subr.bf16.mxu0 0
  %1089 = vmatpush2.bf16.msra.mxu0 0
  %1090 = vmatprep.subr.bf16.mxu0 0
  %1091 = vmatpush2.bf16.msra.mxu0 0
  %1092 = vmatprep.subr.bf16.mxu0 0
  %1093 = vmatpush2.bf16.msra.mxu0 0
  %1094 = vmatprep.subr.bf16.mxu0 0
  %1095 = vmatpush2.bf16.msra.mxu0 0
  %1096 = vmatprep.subr.bf16.mxu0 0
  %1097 = vmatpush2.bf16.msra.mxu0 0
  %1098 = vmatprep.subr.bf16.mxu0 0
  %1099 = vmatpush2.bf16.msra.mxu0 0
  %1100 = vmatprep.subr.bf16.mxu0 0
  %1101 = vmatpush2.bf16.msra.mxu0 0
  %1102 = vmatprep.mubr.bf16.mxu0 0
  %1103 = vmatmul.mubr.bf16.gmra.mxu0 %v1028
  %v1104 = vpop.f32.mrf.mxu0
  %v1105 = vadd.f32 0.0, %v1104
  %v1106 = vpop.f32.mrf.mxu0
  %v1107 = vadd.f32 0.0, %v1106
  %v1108 = vpop.f32.mrf.mxu0
  %v1109 = vpop.f32.mrf.mxu0
  %1110 = vdwg.mxu0
  %v1111 = vadd.f32 %v1024, %v1064
  %v1112 = vadd.f32 %v1025, %v1066
  %v1113 = vadd.f32 %v1026, %v1105
  %v1114 = vadd.f32 %v1027, %v1107
  %v1115 = vxor.u32 %v1111, 2147483648
  %v1116 = vmul.f32 %v1115, 1.442695
  %v1117 = vpow.pop %v1116
  %v1118 = vadd.f32 %v1117, 1.0
  %v1119 = vrcp.pop %v1118
  %v1120 = vmul.f32 1.0, %v1119
  %v1121 = vxor.u32 %v1112, 2147483648
  %v1122 = vmul.f32 %v1121, 1.442695
  %v1123 = vpow.pop %v1122
  %v1124 = vadd.f32 %v1123, 1.0
  %v1125 = vrcp.pop %v1124
  %v1126 = vmul.f32 1.0, %v1125
  %v1127 = vtanh.pop %v1113
  %v1128 = vxor.u32 %v1114, 2147483648
  %v1129 = vmul.f32 %v1128, 1.442695
  %v1130 = vpow.pop %v1129
  %v1131 = vadd.f32 %v1130, 1.0
  %v1132 = vrcp.pop %v1131
  %v1133 = vmul.f32 1.0, %v1132
  %v1134 = vmul.f32 %v1126, %v1020
  %v1135 = vmul.f32 %v1120, %v1127
  %v1136 = vadd.f32 %v1134, %v1135
  %v1137 = vtanh.pop %v1136
  %v1138 = vmul.f32 %v1133, %v1137
  %1139 = vst [vmem:[#allocation2] sm:$0xff] %v1138
  %1140 = vst [vmem:[#allocation3] sm:$0xff] %v1136
  // Predicated region
  $region14: #{rnn_forward.1} parent=0 // pred_check
    %p1141 = pneg %p12
  $region15: #{rnn_forward.1} parent=0 // pred_check_branch
    %1143 = sbr.rel (%p1141) target = $region17
  $region16: #{rnn_forward.1} parent=0 // pred_region
    %1144 = vst [vmem:[%s2] sm:$0xff] %v1138
  $region17: #{rnn_forward.1} parent=0 // pred_fallthru
    _
  // Predicated region
  $region18: #{rnn_forward.1} parent=0 // pred_check
    _
  $region19: #{rnn_forward.1} parent=0 // pred_check_branch
    %1146 = sbr.rel (0) target = $region21
  $region20: #{rnn_forward.1} parent=0 // pred_region
    _
  $region21: #{rnn_forward.1} parent=0 // pred_fallthru
    _
  // Predicated region
  $region22: #{rnn_forward.1} parent=0 // pred_check
    _
  $region23: #{rnn_forward.1} parent=0 // pred_check_branch
    %1148 = sbr.rel (0) target = $region25
  $region24: #{rnn_forward.1} parent=0 // pred_region
    _
  $region25: #{rnn_forward.1} parent=0 // pred_fallthru
    _

</llo_original>
